<compile_context>
chip_gen: v5e
topology: v5e:2x2
jax: 0.10.0
libtpu: 0.0.40
codegen_flags: <defaults>
</compile_context>

<pallas_src>
import functools
import math

import jax
import jax.numpy as jnp
from jax import lax
from jax.experimental import pallas as pl
from jax.experimental.pallas import tpu as pltpu  # noqa: F401  (kept for clarity)

# ----------------------------- config ---------------------------------------
VOCAB_SIZE = 128
BLOCK_SIZE = 16
N_LAYER = 2
N_HEAD = 2
N_EMBD = 32
DROPOUT = 0.0   # identity
LN_EPS = 1e-5

# misc-slab row layout (all rows padded to 4*E = 128 lanes, fp32):
#   rows [0, L*8)           : per layer: ln1_w, ln1_b, b_qkv, b_attn_proj,
#                                        ln2_w, ln2_b, b_fc, b_mlp_proj
#   rows [L*8, L*8+BS)      : wpe (one position per row)
#   row  L*8+BS             : lnf_w
#   row  L*8+BS+1           : lnf_b
_WPE_BASE = N_LAYER * 8
_LNF_W_ROW = _WPE_BASE + BLOCK_SIZE
_LNF_B_ROW = _LNF_W_ROW + 1
_MISC_ROWS = _LNF_B_ROW + 1


# ----------------------------- kernel ---------------------------------------
def _layernorm(y, w, b):
    mu = jnp.mean(y, axis=-1, keepdims=True)
    var = jnp.mean((y - mu) * (y - mu), axis=-1, keepdims=True)
    return (y - mu) * lax.rsqrt(var + LN_EPS) * w + b


def gpt_kernel(
    idx_ref,        # (B*T, 1) int32 token ids (batch-major)
    wte_ref,        # (V, E)   bf16 tied embedding / lm_head weight
    wqkv_ref,       # (L, E, 3E) bf16
    wattn_ref,      # (L, E, E)  bf16 attention output projection
    wfc_ref,        # (L, E, 4E) bf16
    wmlp_ref,       # (L, 4E, E) bf16
    misc_ref,       # (_MISC_ROWS, 4E) fp32 packed LN params / biases / wpe
    logits_ref,     # (B, V) fp32 output (last position per batch element)
    *, batch, seq,
):
    B, T = batch, seq
    BT = B * T
    V, E = wte_ref.shape
    nh = N_HEAD
    hd = E // nh
    scale = 1.0 / math.sqrt(hd)

    # ---- fused embedding gather: onehot(idx) @ wte on the MXU (V=128) ----
    ids = idx_ref[...]                                        # (BT, 1) int32
    iota_v = lax.broadcasted_iota(jnp.int32, (BT, V), 1)
    onehot = (iota_v == ids).astype(jnp.bfloat16)             # (BT, V)
    x = jnp.dot(onehot, wte_ref[...],
                preferred_element_type=jnp.float32)           # (BT, E) fp32
    wpe = misc_ref[_WPE_BASE:_WPE_BASE + T, 0:E]              # (T, E) fp32
    x = x + jnp.concatenate([wpe] * B, axis=0)                # dropout p=0 -> id

    # ---- block-diagonal causal additive bias over (BT, BT), built once ----
    row = lax.broadcasted_iota(jnp.int32, (BT, BT), 0)
    col = lax.broadcasted_iota(jnp.int32, (BT, BT), 1)
    ok = col <= row
    for b in range(1, B):   # forbid cross-batch attention (no int div/mod needed)
        ok = ok & jnp.logical_not((row >= b * T) & (col < b * T))
    causal_bias = jnp.where(ok, jnp.float32(0.0), jnp.float32(-1e30))

    for l in range(N_LAYER):
        base = l * 8
        ln1_w = misc_ref[base + 0, 0:E]
        ln1_b = misc_ref[base + 1, 0:E]
        b_qkv = misc_ref[base + 2, 0:3 * E]
        b_att = misc_ref[base + 3, 0:E]
        ln2_w = misc_ref[base + 4, 0:E]
        ln2_b = misc_ref[base + 5, 0:E]
        b_fc  = misc_ref[base + 6, 0:4 * E]
        b_mlp = misc_ref[base + 7, 0:E]

        # ------------------ attention block ------------------
        h = _layernorm(x, ln1_w, ln1_b)
        qkv = jnp.dot(h.astype(jnp.bfloat16), wqkv_ref[l],
                      preferred_element_type=jnp.float32) + b_qkv   # (BT, 3E)
        heads = []
        for hh in range(nh):                                        # static lane slices
            q = qkv[:, hh * hd:(hh + 1) * hd]
            k = qkv[:, E + hh * hd:E + (hh + 1) * hd]
            v = qkv[:, 2 * E + hh * hd:2 * E + (hh + 1) * hd]
            s = jnp.einsum('qd,kd->qk',
                           q.astype(jnp.bfloat16), k.astype(jnp.bfloat16),
                           preferred_element_type=jnp.float32) * scale
            s = s + causal_bias                                     # fp32
            s = s - jnp.max(s, axis=-1, keepdims=True)
            p = jnp.exp(s)
            p = p * pl.reciprocal(jnp.sum(p, axis=-1, keepdims=True), approx=True)
            heads.append(jnp.dot(p.astype(jnp.bfloat16), v.astype(jnp.bfloat16),
                                 preferred_element_type=jnp.float32))   # (BT, hd)
        y = jnp.concatenate(heads, axis=-1)                         # (BT, E)
        att = jnp.dot(y.astype(jnp.bfloat16), wattn_ref[l],
                      preferred_element_type=jnp.float32) + b_att
        x = x + att

        # ------------------ MLP block ------------------
        h = _layernorm(x, ln2_w, ln2_b)
        h = jnp.dot(h.astype(jnp.bfloat16), wfc_ref[l],
                    preferred_element_type=jnp.float32) + b_fc
        h = jax.nn.gelu(h, approximate=True)
        h = jnp.dot(h.astype(jnp.bfloat16), wmlp_ref[l],
                    preferred_element_type=jnp.float32) + b_mlp
        x = x + h

    # ---- last position per batch element, final LN, tied lm_head ----
    x_last = jnp.concatenate(
        [x[b * T + T - 1:b * T + T, :] for b in range(B)], axis=0)   # (B, E)
    lnf_w = misc_ref[_LNF_W_ROW, 0:E]
    lnf_b = misc_ref[_LNF_B_ROW, 0:E]
    x_last = _layernorm(x_last, lnf_w, lnf_b)
    # logits = x_last @ wte.T  (contract E axis of both; lane-dense V=128 output)
    logits = lax.dot_general(x_last.astype(jnp.bfloat16), wte_ref[...],
                             (((1,), (1,)), ((), ())),
                             preferred_element_type=jnp.float32)     # (B, V)
    logits_ref[...] = logits


# ----------------------------- param prep / wrapper ---------------------------
def prepare_params(params):
    """One-time host-side re-layout: bf16 matmul weights + packed fp32 misc slab."""
    E, L, BS = N_EMBD, N_LAYER, BLOCK_SIZE
    W = 4 * E   # slab lane width = 128

    def pad_row(v):
        v = jnp.asarray(v, jnp.float32).reshape(-1)
        return jnp.pad(v, (0, W - v.shape[0]))

    rows = []
    for l in range(L):
        rows += [params['ln1_w'][l], params['ln1_b'][l],
                 params['b_qkv'][l], params['b_attn_proj'][l],
                 params['ln2_w'][l], params['ln2_b'][l],
                 params['b_fc'][l], params['b_mlp_proj'][l]]
    rows += [params['wpe'][i] for i in range(BS)]
    rows += [params['lnf_w'], params['lnf_b']]
    misc = jnp.stack([pad_row(r) for r in rows])        # (_MISC_ROWS, 4E) fp32
    assert misc.shape == (_MISC_ROWS, W)

    return {
        'wte':    params['wte'].astype(jnp.bfloat16),          # (V, E)
        'w_qkv':  params['w_qkv'].astype(jnp.bfloat16),        # (L, E, 3E)
        'w_attn': params['w_attn_proj'].astype(jnp.bfloat16),  # (L, E, E)
        'w_fc':   params['w_fc'].astype(jnp.bfloat16),         # (L, E, 4E)
        'w_mlp':  params['w_mlp_proj'].astype(jnp.bfloat16),   # (L, 4E, E)
        'misc':   misc,
    }


@jax.jit
def gpt_forward(idx, prep):
    """idx: (B, T) int token ids. Returns (logits (B,1,V), loss=None)."""
    B, T = idx.shape
    assert T <= BLOCK_SIZE
    kernel = functools.partial(gpt_kernel, batch=B, seq=T)
    logits = pl.pallas_call(
        kernel,
        out_shape=jax.ShapeDtypeStruct((B, VOCAB_SIZE), jnp.float32),
    )(
        idx.astype(jnp.int32).reshape(B * T, 1),
        prep['wte'], prep['w_qkv'], prep['w_attn'],
        prep['w_fc'], prep['w_mlp'], prep['misc'],
    )
    return logits.reshape(B, 1, VOCAB_SIZE), None


# ----------------------------- reference (pure JAX, fp32) ---------------------
def _ln_ref(y, w, b):
    mu = jnp.mean(y, axis=-1, keepdims=True)
    var = jnp.mean((y - mu) ** 2, axis=-1, keepdims=True)
    return (y - mu) * lax.rsqrt(var + LN_EPS) * w + b


def gpt_reference(idx, params):
    E, nh, hd = N_EMBD, N_HEAD, N_EMBD // N_HEAD
    B, T = idx.shape
    x = jnp.take(params['wte'], idx, axis=0) + params['wpe'][:T][None]
    causal = jnp.tril(jnp.ones((T, T), bool))
    for l in range(N_LAYER):
        h = _ln_ref(x, params['ln1_w'][l], params['ln1_b'][l])
        qkv = h @ params['w_qkv'][l] + params['b_qkv'][l]
        q, k, v = jnp.split(qkv, 3, axis=-1)
        q = q.reshape(B, T, nh, hd).transpose(0, 2, 1, 3)
        k = k.reshape(B, T, nh, hd).transpose(0, 2, 1, 3)
        v = v.reshape(B, T, nh, hd).transpose(0, 2, 1, 3)
        att = jnp.einsum('bhqd,bhkd->bhqk', q, k) / math.sqrt(hd)
        att = jnp.where(causal[None, None], att, -jnp.inf)
        att = jax.nn.softmax(att, axis=-1)
        y = jnp.einsum('bhqk,bhkd->bhqd', att, v)
        y = y.transpose(0, 2, 1, 3).reshape(B, T, E)
        x = x + y @ params['w_attn_proj'][l] + params['b_attn_proj'][l]
        h = _ln_ref(x, params['ln2_w'][l], params['ln2_b'][l])
        h = jax.nn.gelu(h @ params['w_fc'][l] + params['b_fc'][l], approximate=True)
        x = x + h @ params['w_mlp_proj'][l] + params['b_mlp_proj'][l]
    x = _ln_ref(x, params['lnf_w'], params['lnf_b'])
    return x[:, -1:, :] @ params['wte'].T


# ----------------------------- param init ------------------------------------
def init_params(key):
    E, V, L, BS = N_EMBD, VOCAB_SIZE, N_LAYER, BLOCK_SIZE
    ks = jax.random.split(key, 8)
    std = 0.02
    std_proj = 0.02 / math.sqrt(2 * L)              # c_proj special init
    return {
        'wte': jax.random.normal(ks[0], (V, E), jnp.float32) * std,
        'wpe': jax.random.normal(ks[1], (BS, E), jnp.float32) * std,
        # linear weights stored as (in, out) (transposed vs. torch)
        'w_qkv': jax.random.normal(ks[2], (L, E, 3 * E), jnp.float32) * std,
        'b_qkv': jnp.zeros((L, 3 * E), jnp.float32),
        'w_attn_proj': jax.random.normal(ks[3], (L, E, E), jnp.float32) * std_proj,
        'b_attn_proj': jnp.zeros((L, E), jnp.float32),
        'w_fc': jax.random.normal(ks[4], (L, E, 4 * E), jnp.float32) * std,
        'b_fc': jnp.zeros((L, 4 * E), jnp.float32),
        'w_mlp_proj': jax.random.normal(ks[5], (L, 4 * E, E), jnp.float32) * std_proj,
        'b_mlp_proj': jnp.zeros((L, E), jnp.float32),
        'ln1_w': jnp.ones((L, E), jnp.float32),
        'ln1_b': jnp.zeros((L, E), jnp.float32),
        'ln2_w': jnp.ones((L, E), jnp.float32),
        'ln2_b': jnp.zeros((L, E), jnp.float32),
        'lnf_w': jnp.ones((E,), jnp.float32),
        'lnf_b': jnp.zeros((E,), jnp.float32),
    }


# ----------------------------- main -------------------------------------------
if __name__ == "__main__":
    key = jax.random.PRNGKey(0)
    k_idx, k_par = jax.random.split(key)

    B, T = 2, 8
    idx = jax.random.randint(k_idx, (B, T), 0, VOCAB_SIZE, dtype=jnp.int32)
    params = init_params(k_par)
    prep = prepare_params(params)        # one-time host-side re-layout (bf16 + slab)

    logits, loss = gpt_forward(idx, prep)
    logits = jax.block_until_ready(logits)

    assert logits.shape == (B, 1, VOCAB_SIZE)
    assert logits.dtype == jnp.float32
    assert bool(jnp.all(jnp.isfinite(logits)))

    ref = jax.block_until_ready(gpt_reference(idx, params))
    # bf16 MXU operands bound the achievable agreement vs. the fp32 reference
    # to ~1e-2 on these small-magnitude logits.
    err = float(jnp.max(jnp.abs(logits - ref)))
    assert bool(jnp.allclose(logits, ref, atol=2e-2, rtol=2e-2)), err

    print("KERNEL_OK")
</pallas_src>

<mosaic_0001>
module attributes {stable_mosaic.version = 11 : i64} {
  func.func @gpt_kernel(%arg0: memref<16x1xi32, #tpu.memory_space<vmem>>, %arg1: memref<128x32xbf16, #tpu.memory_space<vmem>>, %arg2: memref<2x32x96xbf16, #tpu.memory_space<vmem>>, %arg3: memref<2x32x32xbf16, #tpu.memory_space<vmem>>, %arg4: memref<2x32x128xbf16, #tpu.memory_space<vmem>>, %arg5: memref<2x128x32xbf16, #tpu.memory_space<vmem>>, %arg6: memref<34x128xf32, #tpu.memory_space<vmem>>, %arg7: memref<2x128xf32, #tpu.memory_space<vmem>>) attributes {dimension_semantics = [], scalar_prefetch = 0 : i64, scratch_operands = 0 : i64, tpu.core_type = #tpu.core_type<tc>} {
    %c0 = arith.constant 0 : index
    %c0_0 = arith.constant 0 : index
    %0 = vector.load %arg0[%c0, %c0_0] : memref<16x1xi32, #tpu.memory_space<vmem>>, vector<16x1xi32>
    %1 = tpu.iota {dimensions = array<i32: 1>} : vector<16x128xi32>
    %2 = vector.broadcast %0 : vector<16x1xi32> to vector<16x128xi32>
    %3 = arith.cmpi eq, %1, %2 : vector<16x128xi32>
    %4 = arith.extui %3 : vector<16x128xi1> to vector<16x128xi32>
    %5 = arith.sitofp %4 : vector<16x128xi32> to vector<16x128xf32>
    %6 = arith.truncf %5 : vector<16x128xf32> to vector<16x128xbf16>
    %c0_1 = arith.constant 0 : index
    %c0_2 = arith.constant 0 : index
    %7 = vector.load %arg1[%c0_1, %c0_2] : memref<128x32xbf16, #tpu.memory_space<vmem>>, vector<128x32xbf16>
    %cst = arith.constant dense<0.000000e+00> : vector<16x32xf32>
    %8 = tpu.matmul %6, %7, %cst {dimension_numbers = #tpu.dot_dimension_numbers<[1], [0], [0], [1], [0, 0, 1, 1], [], []>} : vector<16x128xbf16>, vector<128x32xbf16>, vector<16x32xf32> -> vector<16x32xf32>
    %c16 = arith.constant 16 : index
    %c0_3 = arith.constant 0 : index
    %9 = vector.load %arg6[%c16, %c0_3] : memref<34x128xf32, #tpu.memory_space<vmem>>, vector<8x32xf32>
    %10 = tpu.concatenate %9, %9 in 0 : vector<8x32xf32>, vector<8x32xf32> -> vector<16x32xf32>
    %11 = arith.addf %8, %10 : vector<16x32xf32>
    %12 = tpu.iota {dimensions = array<i32: 0>} : vector<16x16xi32>
    %13 = tpu.iota {dimensions = array<i32: 1>} : vector<16x16xi32>
    %14 = arith.cmpi sle, %13, %12 : vector<16x16xi32>
    %c8_i32 = arith.constant 8 : i32
    %15 = vector.broadcast %c8_i32 : i32 to vector<16x16xi32>
    %16 = arith.cmpi sge, %12, %15 : vector<16x16xi32>
    %c8_i32_4 = arith.constant 8 : i32
    %17 = vector.broadcast %c8_i32_4 : i32 to vector<16x16xi32>
    %18 = arith.cmpi slt, %13, %17 : vector<16x16xi32>
    %19 = arith.andi %16, %18 : vector<16x16xi1>
    %cst_5 = arith.constant dense<true> : vector<16x16xi1>
    %20 = arith.xori %19, %cst_5 : vector<16x16xi1>
    %21 = arith.andi %14, %20 : vector<16x16xi1>
    %cst_6 = arith.constant 0.000000e+00 : f32
    %cst_7 = arith.constant -1.000000e+30 : f32
    %22 = vector.broadcast %cst_6 : f32 to vector<16x16xf32>
    %23 = vector.broadcast %cst_7 : f32 to vector<16x16xf32>
    %24 = arith.select %21, %22, %23 : vector<16x16xi1>, vector<16x16xf32>
    %c0_8 = arith.constant 0 : index
    %c0_9 = arith.constant 0 : index
    %25 = vector.load %arg6[%c0_8, %c0_9] : memref<34x128xf32, #tpu.memory_space<vmem>>, vector<1x32xf32>
    %26 = vector.shape_cast %25 : vector<1x32xf32> to vector<32xf32>
    %c1 = arith.constant 1 : index
    %c0_10 = arith.constant 0 : index
    %27 = vector.load %arg6[%c1, %c0_10] : memref<34x128xf32, #tpu.memory_space<vmem>>, vector<1x32xf32>
    %28 = vector.shape_cast %27 : vector<1x32xf32> to vector<32xf32>
    %c2 = arith.constant 2 : index
    %c0_11 = arith.constant 0 : index
    %29 = vector.load %arg6[%c2, %c0_11] : memref<34x128xf32, #tpu.memory_space<vmem>>, vector<1x96xf32>
    %30 = vector.shape_cast %29 : vector<1x96xf32> to vector<96xf32>
    %c3 = arith.constant 3 : index
    %c0_12 = arith.constant 0 : index
    %31 = vector.load %arg6[%c3, %c0_12] : memref<34x128xf32, #tpu.memory_space<vmem>>, vector<1x32xf32>
    %32 = vector.shape_cast %31 : vector<1x32xf32> to vector<32xf32>
    %c4 = arith.constant 4 : index
    %c0_13 = arith.constant 0 : index
    %33 = vector.load %arg6[%c4, %c0_13] : memref<34x128xf32, #tpu.memory_space<vmem>>, vector<1x32xf32>
    %34 = vector.shape_cast %33 : vector<1x32xf32> to vector<32xf32>
    %c5 = arith.constant 5 : index
    %c0_14 = arith.constant 0 : index
    %35 = vector.load %arg6[%c5, %c0_14] : memref<34x128xf32, #tpu.memory_space<vmem>>, vector<1x32xf32>
    %36 = vector.shape_cast %35 : vector<1x32xf32> to vector<32xf32>
    %c6 = arith.constant 6 : index
    %c0_15 = arith.constant 0 : index
    %37 = vector.load %arg6[%c6, %c0_15] : memref<34x128xf32, #tpu.memory_space<vmem>>, vector<1x128xf32>
    %38 = vector.shape_cast %37 : vector<1x128xf32> to vector<128xf32>
    %c7 = arith.constant 7 : index
    %c0_16 = arith.constant 0 : index
    %39 = vector.load %arg6[%c7, %c0_16] : memref<34x128xf32, #tpu.memory_space<vmem>>, vector<1x32xf32>
    %40 = vector.shape_cast %39 : vector<1x32xf32> to vector<32xf32>
    %cst_17 = arith.constant dense<0.000000e+00> : vector<16xf32>
    %41 = vector.multi_reduction <add>, %11, %cst_17 [1] : vector<16x32xf32> to vector<16xf32>
    %42 = vector.shape_cast %41 : vector<16xf32> to vector<16x1xf32>
    %cst_18 = arith.constant 3.200000e+01 : f32
    %43 = vector.broadcast %cst_18 : f32 to vector<16x1xf32>
    %44 = arith.divf %42, %43 : vector<16x1xf32>
    %45 = vector.broadcast %44 : vector<16x1xf32> to vector<16x32xf32>
    %46 = arith.subf %11, %45 : vector<16x32xf32>
    %47 = vector.broadcast %44 : vector<16x1xf32> to vector<16x32xf32>
    %48 = arith.subf %11, %47 : vector<16x32xf32>
    %49 = arith.mulf %46, %48 : vector<16x32xf32>
    %cst_19 = arith.constant dense<0.000000e+00> : vector<16xf32>
    %50 = vector.multi_reduction <add>, %49, %cst_19 [1] : vector<16x32xf32> to vector<16xf32>
    %51 = vector.shape_cast %50 : vector<16xf32> to vector<16x1xf32>
    %cst_20 = arith.constant 3.200000e+01 : f32
    %52 = vector.broadcast %cst_20 : f32 to vector<16x1xf32>
    %53 = arith.divf %51, %52 : vector<16x1xf32>
    %54 = vector.broadcast %44 : vector<16x1xf32> to vector<16x32xf32>
    %55 = arith.subf %11, %54 : vector<16x32xf32>
    %cst_21 = arith.constant 9.99999974E-6 : f32
    %56 = vector.broadcast %cst_21 : f32 to vector<16x1xf32>
    %57 = arith.addf %53, %56 : vector<16x1xf32>
    %58 = math.rsqrt %57 : vector<16x1xf32>
    %59 = vector.broadcast %58 : vector<16x1xf32> to vector<16x32xf32>
    %60 = arith.mulf %55, %59 : vector<16x32xf32>
    %61 = vector.shape_cast %26 : vector<32xf32> to vector<1x32xf32>
    %62 = vector.broadcast %61 : vector<1x32xf32> to vector<16x32xf32>
    %63 = arith.mulf %60, %62 : vector<16x32xf32>
    %64 = vector.shape_cast %28 : vector<32xf32> to vector<1x32xf32>
    %65 = vector.broadcast %64 : vector<1x32xf32> to vector<16x32xf32>
    %66 = arith.addf %63, %65 : vector<16x32xf32>
    %67 = arith.truncf %66 : vector<16x32xf32> to vector<16x32xbf16>
    %c0_22 = arith.constant 0 : index
    %c0_23 = arith.constant 0 : index
    %c0_24 = arith.constant 0 : index
    %68 = vector.load %arg2[%c0_22, %c0_23, %c0_24] : memref<2x32x96xbf16, #tpu.memory_space<vmem>>, vector<1x32x96xbf16>
    %69 = vector.shape_cast %68 : vector<1x32x96xbf16> to vector<32x96xbf16>
    %cst_25 = arith.constant dense<0.000000e+00> : vector<16x96xf32>
    %70 = tpu.matmul %67, %69, %cst_25 {dimension_numbers = #tpu.dot_dimension_numbers<[1], [0], [0], [1], [0, 0, 1, 1], [], []>} : vector<16x32xbf16>, vector<32x96xbf16>, vector<16x96xf32> -> vector<16x96xf32>
    %71 = vector.shape_cast %30 : vector<96xf32> to vector<1x96xf32>
    %72 = vector.broadcast %71 : vector<1x96xf32> to vector<16x96xf32>
    %73 = arith.addf %70, %72 : vector<16x96xf32>
    %74 = vector.extract_strided_slice %73 {offsets = [0, 0], sizes = [16, 16], strides = [1, 1]} : vector<16x96xf32> to vector<16x16xf32>
    %75 = vector.extract_strided_slice %73 {offsets = [0, 32], sizes = [16, 16], strides = [1, 1]} : vector<16x96xf32> to vector<16x16xf32>
    %76 = vector.extract_strided_slice %73 {offsets = [0, 64], sizes = [16, 16], strides = [1, 1]} : vector<16x96xf32> to vector<16x16xf32>
    %77 = arith.truncf %74 : vector<16x16xf32> to vector<16x16xbf16>
    %78 = arith.truncf %75 : vector<16x16xf32> to vector<16x16xbf16>
    "tpu.trace_start"() <{level = 10 : i32, message = "qd,kd->qk"}> : () -> ()
    %cst_26 = arith.constant dense<0.000000e+00> : vector<16x16xf32>
    %79 = tpu.matmul %77, %78, %cst_26 {dimension_numbers = #tpu.dot_dimension_numbers<[1], [1], [0], [0], [0, 0, 1, 0], [], []>} : vector<16x16xbf16>, vector<16x16xbf16>, vector<16x16xf32> -> vector<16x16xf32>
    "tpu.trace_stop"() : () -> ()
    %cst_27 = arith.constant 2.500000e-01 : f32
    %80 = vector.broadcast %cst_27 : f32 to vector<16x16xf32>
    %81 = arith.mulf %79, %80 : vector<16x16xf32>
    %82 = arith.addf %81, %24 : vector<16x16xf32>
    %cst_28 = arith.constant dense<0xFF800000> : vector<16xf32>
    %83 = vector.multi_reduction <maximumf>, %82, %cst_28 [1] : vector<16x16xf32> to vector<16xf32>
    %84 = vector.shape_cast %83 : vector<16xf32> to vector<16x1xf32>
    %85 = vector.broadcast %84 : vector<16x1xf32> to vector<16x16xf32>
    %86 = arith.subf %82, %85 : vector<16x16xf32>
    %87 = math.exp %86 : vector<16x16xf32>
    %cst_29 = arith.constant dense<0.000000e+00> : vector<16xf32>
    %88 = vector.multi_reduction <add>, %87, %cst_29 [1] : vector<16x16xf32> to vector<16xf32>
    %89 = vector.shape_cast %88 : vector<16xf32> to vector<16x1xf32>
    %90 = tpu.reciprocal %89 {approx = true} : vector<16x1xf32> -> vector<16x1xf32>
    %91 = vector.broadcast %90 : vector<16x1xf32> to vector<16x16xf32>
    %92 = arith.mulf %87, %91 : vector<16x16xf32>
    %93 = arith.truncf %92 : vector<16x16xf32> to vector<16x16xbf16>
    %94 = arith.truncf %76 : vector<16x16xf32> to vector<16x16xbf16>
    %cst_30 = arith.constant dense<0.000000e+00> : vector<16x16xf32>
    %95 = tpu.matmul %93, %94, %cst_30 {dimension_numbers = #tpu.dot_dimension_numbers<[1], [0], [0], [1], [0, 0, 1, 1], [], []>} : vector<16x16xbf16>, vector<16x16xbf16>, vector<16x16xf32> -> vector<16x16xf32>
    %96 = vector.extract_strided_slice %73 {offsets = [0, 16], sizes = [16, 16], strides = [1, 1]} : vector<16x96xf32> to vector<16x16xf32>
    %97 = vector.extract_strided_slice %73 {offsets = [0, 48], sizes = [16, 16], strides = [1, 1]} : vector<16x96xf32> to vector<16x16xf32>
    %98 = vector.extract_strided_slice %73 {offsets = [0, 80], sizes = [16, 16], strides = [1, 1]} : vector<16x96xf32> to vector<16x16xf32>
    %99 = arith.truncf %96 : vector<16x16xf32> to vector<16x16xbf16>
    %100 = arith.truncf %97 : vector<16x16xf32> to vector<16x16xbf16>
    "tpu.trace_start"() <{level = 10 : i32, message = "qd,kd->qk"}> : () -> ()
    %cst_31 = arith.constant dense<0.000000e+00> : vector<16x16xf32>
    %101 = tpu.matmul %99, %100, %cst_31 {dimension_numbers = #tpu.dot_dimension_numbers<[1], [1], [0], [0], [0, 0, 1, 0], [], []>} : vector<16x16xbf16>, vector<16x16xbf16>, vector<16x16xf32> -> vector<16x16xf32>
    "tpu.trace_stop"() : () -> ()
    %cst_32 = arith.constant 2.500000e-01 : f32
    %102 = vector.broadcast %cst_32 : f32 to vector<16x16xf32>
    %103 = arith.mulf %101, %102 : vector<16x16xf32>
    %104 = arith.addf %103, %24 : vector<16x16xf32>
    %cst_33 = arith.constant dense<0xFF800000> : vector<16xf32>
    %105 = vector.multi_reduction <maximumf>, %104, %cst_33 [1] : vector<16x16xf32> to vector<16xf32>
    %106 = vector.shape_cast %105 : vector<16xf32> to vector<16x1xf32>
    %107 = vector.broadcast %106 : vector<16x1xf32> to vector<16x16xf32>
    %108 = arith.subf %104, %107 : vector<16x16xf32>
    %109 = math.exp %108 : vector<16x16xf32>
    %cst_34 = arith.constant dense<0.000000e+00> : vector<16xf32>
    %110 = vector.multi_reduction <add>, %109, %cst_34 [1] : vector<16x16xf32> to vector<16xf32>
    %111 = vector.shape_cast %110 : vector<16xf32> to vector<16x1xf32>
    %112 = tpu.reciprocal %111 {approx = true} : vector<16x1xf32> -> vector<16x1xf32>
    %113 = vector.broadcast %112 : vector<16x1xf32> to vector<16x16xf32>
    %114 = arith.mulf %109, %113 : vector<16x16xf32>
    %115 = arith.truncf %114 : vector<16x16xf32> to vector<16x16xbf16>
    %116 = arith.truncf %98 : vector<16x16xf32> to vector<16x16xbf16>
    %cst_35 = arith.constant dense<0.000000e+00> : vector<16x16xf32>
    %117 = tpu.matmul %115, %116, %cst_35 {dimension_numbers = #tpu.dot_dimension_numbers<[1], [0], [0], [1], [0, 0, 1, 1], [], []>} : vector<16x16xbf16>, vector<16x16xbf16>, vector<16x16xf32> -> vector<16x16xf32>
    %118 = tpu.concatenate %95, %117 in 1 : vector<16x16xf32>, vector<16x16xf32> -> vector<16x32xf32>
    %119 = arith.truncf %118 : vector<16x32xf32> to vector<16x32xbf16>
    %c0_36 = arith.constant 0 : index
    %c0_37 = arith.constant 0 : index
    %c0_38 = arith.constant 0 : index
    %120 = vector.load %arg3[%c0_36, %c0_37, %c0_38] : memref<2x32x32xbf16, #tpu.memory_space<vmem>>, vector<1x32x32xbf16>
    %121 = vector.shape_cast %120 : vector<1x32x32xbf16> to vector<32x32xbf16>
    %cst_39 = arith.constant dense<0.000000e+00> : vector<16x32xf32>
    %122 = tpu.matmul %119, %121, %cst_39 {dimension_numbers = #tpu.dot_dimension_numbers<[1], [0], [0], [1], [0, 0, 1, 1], [], []>} : vector<16x32xbf16>, vector<32x32xbf16>, vector<16x32xf32> -> vector<16x32xf32>
    %123 = vector.shape_cast %32 : vector<32xf32> to vector<1x32xf32>
    %124 = vector.broadcast %123 : vector<1x32xf32> to vector<16x32xf32>
    %125 = arith.addf %122, %124 : vector<16x32xf32>
    %126 = arith.addf %11, %125 : vector<16x32xf32>
    %cst_40 = arith.constant dense<0.000000e+00> : vector<16xf32>
    %127 = vector.multi_reduction <add>, %126, %cst_40 [1] : vector<16x32xf32> to vector<16xf32>
    %128 = vector.shape_cast %127 : vector<16xf32> to vector<16x1xf32>
    %cst_41 = arith.constant 3.200000e+01 : f32
    %129 = vector.broadcast %cst_41 : f32 to vector<16x1xf32>
    %130 = arith.divf %128, %129 : vector<16x1xf32>
    %131 = vector.broadcast %130 : vector<16x1xf32> to vector<16x32xf32>
    %132 = arith.subf %126, %131 : vector<16x32xf32>
    %133 = vector.broadcast %130 : vector<16x1xf32> to vector<16x32xf32>
    %134 = arith.subf %126, %133 : vector<16x32xf32>
    %135 = arith.mulf %132, %134 : vector<16x32xf32>
    %cst_42 = arith.constant dense<0.000000e+00> : vector<16xf32>
    %136 = vector.multi_reduction <add>, %135, %cst_42 [1] : vector<16x32xf32> to vector<16xf32>
    %137 = vector.shape_cast %136 : vector<16xf32> to vector<16x1xf32>
    %cst_43 = arith.constant 3.200000e+01 : f32
    %138 = vector.broadcast %cst_43 : f32 to vector<16x1xf32>
    %139 = arith.divf %137, %138 : vector<16x1xf32>
    %140 = vector.broadcast %130 : vector<16x1xf32> to vector<16x32xf32>
    %141 = arith.subf %126, %140 : vector<16x32xf32>
    %cst_44 = arith.constant 9.99999974E-6 : f32
    %142 = vector.broadcast %cst_44 : f32 to vector<16x1xf32>
    %143 = arith.addf %139, %142 : vector<16x1xf32>
    %144 = math.rsqrt %143 : vector<16x1xf32>
    %145 = vector.broadcast %144 : vector<16x1xf32> to vector<16x32xf32>
    %146 = arith.mulf %141, %145 : vector<16x32xf32>
    %147 = vector.shape_cast %34 : vector<32xf32> to vector<1x32xf32>
    %148 = vector.broadcast %147 : vector<1x32xf32> to vector<16x32xf32>
    %149 = arith.mulf %146, %148 : vector<16x32xf32>
    %150 = vector.shape_cast %36 : vector<32xf32> to vector<1x32xf32>
    %151 = vector.broadcast %150 : vector<1x32xf32> to vector<16x32xf32>
    %152 = arith.addf %149, %151 : vector<16x32xf32>
    %153 = arith.truncf %152 : vector<16x32xf32> to vector<16x32xbf16>
    %c0_45 = arith.constant 0 : index
    %c0_46 = arith.constant 0 : index
    %c0_47 = arith.constant 0 : index
    %154 = vector.load %arg4[%c0_45, %c0_46, %c0_47] : memref<2x32x128xbf16, #tpu.memory_space<vmem>>, vector<1x32x128xbf16>
    %155 = vector.shape_cast %154 : vector<1x32x128xbf16> to vector<32x128xbf16>
    %cst_48 = arith.constant dense<0.000000e+00> : vector<16x128xf32>
    %156 = tpu.matmul %153, %155, %cst_48 {dimension_numbers = #tpu.dot_dimension_numbers<[1], [0], [0], [1], [0, 0, 1, 1], [], []>} : vector<16x32xbf16>, vector<32x128xbf16>, vector<16x128xf32> -> vector<16x128xf32>
    %157 = vector.shape_cast %38 : vector<128xf32> to vector<1x128xf32>
    %158 = vector.broadcast %157 : vector<1x128xf32> to vector<16x128xf32>
    %159 = arith.addf %156, %158 : vector<16x128xf32>
    %160 = arith.mulf %159, %159 : vector<16x128xf32>
    %161 = arith.mulf %159, %160 : vector<16x128xf32>
    %cst_49 = arith.constant 4.471500e-02 : f32
    %162 = vector.broadcast %cst_49 : f32 to vector<16x128xf32>
    %163 = arith.mulf %162, %161 : vector<16x128xf32>
    %164 = arith.addf %159, %163 : vector<16x128xf32>
    %cst_50 = arith.constant 0.797884583 : f32
    %165 = vector.broadcast %cst_50 : f32 to vector<16x128xf32>
    %166 = arith.mulf %165, %164 : vector<16x128xf32>
    %167 = math.tanh %166 : vector<16x128xf32>
    %cst_51 = arith.constant 1.000000e+00 : f32
    %168 = vector.broadcast %cst_51 : f32 to vector<16x128xf32>
    %169 = arith.addf %168, %167 : vector<16x128xf32>
    %cst_52 = arith.constant 5.000000e-01 : f32
    %170 = vector.broadcast %cst_52 : f32 to vector<16x128xf32>
    %171 = arith.mulf %170, %169 : vector<16x128xf32>
    %172 = arith.mulf %159, %171 : vector<16x128xf32>
    %173 = arith.truncf %172 : vector<16x128xf32> to vector<16x128xbf16>
    %c0_53 = arith.constant 0 : index
    %c0_54 = arith.constant 0 : index
    %c0_55 = arith.constant 0 : index
    %174 = vector.load %arg5[%c0_53, %c0_54, %c0_55] : memref<2x128x32xbf16, #tpu.memory_space<vmem>>, vector<1x128x32xbf16>
    %175 = vector.shape_cast %174 : vector<1x128x32xbf16> to vector<128x32xbf16>
    %cst_56 = arith.constant dense<0.000000e+00> : vector<16x32xf32>
    %176 = tpu.matmul %173, %175, %cst_56 {dimension_numbers = #tpu.dot_dimension_numbers<[1], [0], [0], [1], [0, 0, 1, 1], [], []>} : vector<16x128xbf16>, vector<128x32xbf16>, vector<16x32xf32> -> vector<16x32xf32>
    %177 = vector.shape_cast %40 : vector<32xf32> to vector<1x32xf32>
    %178 = vector.broadcast %177 : vector<1x32xf32> to vector<16x32xf32>
    %179 = arith.addf %176, %178 : vector<16x32xf32>
    %180 = arith.addf %126, %179 : vector<16x32xf32>
    %c8 = arith.constant 8 : index
    %c0_57 = arith.constant 0 : index
    %181 = vector.load %arg6[%c8, %c0_57] : memref<34x128xf32, #tpu.memory_space<vmem>>, vector<1x32xf32>
    %182 = vector.shape_cast %181 : vector<1x32xf32> to vector<32xf32>
    %c9 = arith.constant 9 : index
    %c0_58 = arith.constant 0 : index
    %183 = vector.load %arg6[%c9, %c0_58] : memref<34x128xf32, #tpu.memory_space<vmem>>, vector<1x32xf32>
    %184 = vector.shape_cast %183 : vector<1x32xf32> to vector<32xf32>
    %c10 = arith.constant 10 : index
    %c0_59 = arith.constant 0 : index
    %185 = vector.load %arg6[%c10, %c0_59] : memref<34x128xf32, #tpu.memory_space<vmem>>, vector<1x96xf32>
    %186 = vector.shape_cast %185 : vector<1x96xf32> to vector<96xf32>
    %c11 = arith.constant 11 : index
    %c0_60 = arith.constant 0 : index
    %187 = vector.load %arg6[%c11, %c0_60] : memref<34x128xf32, #tpu.memory_space<vmem>>, vector<1x32xf32>
    %188 = vector.shape_cast %187 : vector<1x32xf32> to vector<32xf32>
    %c12 = arith.constant 12 : index
    %c0_61 = arith.constant 0 : index
    %189 = vector.load %arg6[%c12, %c0_61] : memref<34x128xf32, #tpu.memory_space<vmem>>, vector<1x32xf32>
    %190 = vector.shape_cast %189 : vector<1x32xf32> to vector<32xf32>
    %c13 = arith.constant 13 : index
    %c0_62 = arith.constant 0 : index
    %191 = vector.load %arg6[%c13, %c0_62] : memref<34x128xf32, #tpu.memory_space<vmem>>, vector<1x32xf32>
    %192 = vector.shape_cast %191 : vector<1x32xf32> to vector<32xf32>
    %c14 = arith.constant 14 : index
    %c0_63 = arith.constant 0 : index
    %193 = vector.load %arg6[%c14, %c0_63] : memref<34x128xf32, #tpu.memory_space<vmem>>, vector<1x128xf32>
    %194 = vector.shape_cast %193 : vector<1x128xf32> to vector<128xf32>
    %c15 = arith.constant 15 : index
    %c0_64 = arith.constant 0 : index
    %195 = vector.load %arg6[%c15, %c0_64] : memref<34x128xf32, #tpu.memory_space<vmem>>, vector<1x32xf32>
    %196 = vector.shape_cast %195 : vector<1x32xf32> to vector<32xf32>
    %cst_65 = arith.constant dense<0.000000e+00> : vector<16xf32>
    %197 = vector.multi_reduction <add>, %180, %cst_65 [1] : vector<16x32xf32> to vector<16xf32>
    %198 = vector.shape_cast %197 : vector<16xf32> to vector<16x1xf32>
    %cst_66 = arith.constant 3.200000e+01 : f32
    %199 = vector.broadcast %cst_66 : f32 to vector<16x1xf32>
    %200 = arith.divf %198, %199 : vector<16x1xf32>
    %201 = vector.broadcast %200 : vector<16x1xf32> to vector<16x32xf32>
    %202 = arith.subf %180, %201 : vector<16x32xf32>
    %203 = vector.broadcast %200 : vector<16x1xf32> to vector<16x32xf32>
    %204 = arith.subf %180, %203 : vector<16x32xf32>
    %205 = arith.mulf %202, %204 : vector<16x32xf32>
    %cst_67 = arith.constant dense<0.000000e+00> : vector<16xf32>
    %206 = vector.multi_reduction <add>, %205, %cst_67 [1] : vector<16x32xf32> to vector<16xf32>
    %207 = vector.shape_cast %206 : vector<16xf32> to vector<16x1xf32>
    %cst_68 = arith.constant 3.200000e+01 : f32
    %208 = vector.broadcast %cst_68 : f32 to vector<16x1xf32>
    %209 = arith.divf %207, %208 : vector<16x1xf32>
    %210 = vector.broadcast %200 : vector<16x1xf32> to vector<16x32xf32>
    %211 = arith.subf %180, %210 : vector<16x32xf32>
    %cst_69 = arith.constant 9.99999974E-6 : f32
    %212 = vector.broadcast %cst_69 : f32 to vector<16x1xf32>
    %213 = arith.addf %209, %212 : vector<16x1xf32>
    %214 = math.rsqrt %213 : vector<16x1xf32>
    %215 = vector.broadcast %214 : vector<16x1xf32> to vector<16x32xf32>
    %216 = arith.mulf %211, %215 : vector<16x32xf32>
    %217 = vector.shape_cast %182 : vector<32xf32> to vector<1x32xf32>
    %218 = vector.broadcast %217 : vector<1x32xf32> to vector<16x32xf32>
    %219 = arith.mulf %216, %218 : vector<16x32xf32>
    %220 = vector.shape_cast %184 : vector<32xf32> to vector<1x32xf32>
    %221 = vector.broadcast %220 : vector<1x32xf32> to vector<16x32xf32>
    %222 = arith.addf %219, %221 : vector<16x32xf32>
    %223 = arith.truncf %222 : vector<16x32xf32> to vector<16x32xbf16>
    %c1_70 = arith.constant 1 : index
    %c0_71 = arith.constant 0 : index
    %c0_72 = arith.constant 0 : index
    %224 = vector.load %arg2[%c1_70, %c0_71, %c0_72] : memref<2x32x96xbf16, #tpu.memory_space<vmem>>, vector<1x32x96xbf16>
    %225 = vector.shape_cast %224 : vector<1x32x96xbf16> to vector<32x96xbf16>
    %cst_73 = arith.constant dense<0.000000e+00> : vector<16x96xf32>
    %226 = tpu.matmul %223, %225, %cst_73 {dimension_numbers = #tpu.dot_dimension_numbers<[1], [0], [0], [1], [0, 0, 1, 1], [], []>} : vector<16x32xbf16>, vector<32x96xbf16>, vector<16x96xf32> -> vector<16x96xf32>
    %227 = vector.shape_cast %186 : vector<96xf32> to vector<1x96xf32>
    %228 = vector.broadcast %227 : vector<1x96xf32> to vector<16x96xf32>
    %229 = arith.addf %226, %228 : vector<16x96xf32>
    %230 = vector.extract_strided_slice %229 {offsets = [0, 0], sizes = [16, 16], strides = [1, 1]} : vector<16x96xf32> to vector<16x16xf32>
    %231 = vector.extract_strided_slice %229 {offsets = [0, 32], sizes = [16, 16], strides = [1, 1]} : vector<16x96xf32> to vector<16x16xf32>
    %232 = vector.extract_strided_slice %229 {offsets = [0, 64], sizes = [16, 16], strides = [1, 1]} : vector<16x96xf32> to vector<16x16xf32>
    %233 = arith.truncf %230 : vector<16x16xf32> to vector<16x16xbf16>
    %234 = arith.truncf %231 : vector<16x16xf32> to vector<16x16xbf16>
    "tpu.trace_start"() <{level = 10 : i32, message = "qd,kd->qk"}> : () -> ()
    %cst_74 = arith.constant dense<0.000000e+00> : vector<16x16xf32>
    %235 = tpu.matmul %233, %234, %cst_74 {dimension_numbers = #tpu.dot_dimension_numbers<[1], [1], [0], [0], [0, 0, 1, 0], [], []>} : vector<16x16xbf16>, vector<16x16xbf16>, vector<16x16xf32> -> vector<16x16xf32>
    "tpu.trace_stop"() : () -> ()
    %cst_75 = arith.constant 2.500000e-01 : f32
    %236 = vector.broadcast %cst_75 : f32 to vector<16x16xf32>
    %237 = arith.mulf %235, %236 : vector<16x16xf32>
    %238 = arith.addf %237, %24 : vector<16x16xf32>
    %cst_76 = arith.constant dense<0xFF800000> : vector<16xf32>
    %239 = vector.multi_reduction <maximumf>, %238, %cst_76 [1] : vector<16x16xf32> to vector<16xf32>
    %240 = vector.shape_cast %239 : vector<16xf32> to vector<16x1xf32>
    %241 = vector.broadcast %240 : vector<16x1xf32> to vector<16x16xf32>
    %242 = arith.subf %238, %241 : vector<16x16xf32>
    %243 = math.exp %242 : vector<16x16xf32>
    %cst_77 = arith.constant dense<0.000000e+00> : vector<16xf32>
    %244 = vector.multi_reduction <add>, %243, %cst_77 [1] : vector<16x16xf32> to vector<16xf32>
    %245 = vector.shape_cast %244 : vector<16xf32> to vector<16x1xf32>
    %246 = tpu.reciprocal %245 {approx = true} : vector<16x1xf32> -> vector<16x1xf32>
    %247 = vector.broadcast %246 : vector<16x1xf32> to vector<16x16xf32>
    %248 = arith.mulf %243, %247 : vector<16x16xf32>
    %249 = arith.truncf %248 : vector<16x16xf32> to vector<16x16xbf16>
    %250 = arith.truncf %232 : vector<16x16xf32> to vector<16x16xbf16>
    %cst_78 = arith.constant dense<0.000000e+00> : vector<16x16xf32>
    %251 = tpu.matmul %249, %250, %cst_78 {dimension_numbers = #tpu.dot_dimension_numbers<[1], [0], [0], [1], [0, 0, 1, 1], [], []>} : vector<16x16xbf16>, vector<16x16xbf16>, vector<16x16xf32> -> vector<16x16xf32>
    %252 = vector.extract_strided_slice %229 {offsets = [0, 16], sizes = [16, 16], strides = [1, 1]} : vector<16x96xf32> to vector<16x16xf32>
    %253 = vector.extract_strided_slice %229 {offsets = [0, 48], sizes = [16, 16], strides = [1, 1]} : vector<16x96xf32> to vector<16x16xf32>
    %254 = vector.extract_strided_slice %229 {offsets = [0, 80], sizes = [16, 16], strides = [1, 1]} : vector<16x96xf32> to vector<16x16xf32>
    %255 = arith.truncf %252 : vector<16x16xf32> to vector<16x16xbf16>
    %256 = arith.truncf %253 : vector<16x16xf32> to vector<16x16xbf16>
    "tpu.trace_start"() <{level = 10 : i32, message = "qd,kd->qk"}> : () -> ()
    %cst_79 = arith.constant dense<0.000000e+00> : vector<16x16xf32>
    %257 = tpu.matmul %255, %256, %cst_79 {dimension_numbers = #tpu.dot_dimension_numbers<[1], [1], [0], [0], [0, 0, 1, 0], [], []>} : vector<16x16xbf16>, vector<16x16xbf16>, vector<16x16xf32> -> vector<16x16xf32>
    "tpu.trace_stop"() : () -> ()
    %cst_80 = arith.constant 2.500000e-01 : f32
    %258 = vector.broadcast %cst_80 : f32 to vector<16x16xf32>
    %259 = arith.mulf %257, %258 : vector<16x16xf32>
    %260 = arith.addf %259, %24 : vector<16x16xf32>
    %cst_81 = arith.constant dense<0xFF800000> : vector<16xf32>
    %261 = vector.multi_reduction <maximumf>, %260, %cst_81 [1] : vector<16x16xf32> to vector<16xf32>
    %262 = vector.shape_cast %261 : vector<16xf32> to vector<16x1xf32>
    %263 = vector.broadcast %262 : vector<16x1xf32> to vector<16x16xf32>
    %264 = arith.subf %260, %263 : vector<16x16xf32>
    %265 = math.exp %264 : vector<16x16xf32>
    %cst_82 = arith.constant dense<0.000000e+00> : vector<16xf32>
    %266 = vector.multi_reduction <add>, %265, %cst_82 [1] : vector<16x16xf32> to vector<16xf32>
    %267 = vector.shape_cast %266 : vector<16xf32> to vector<16x1xf32>
    %268 = tpu.reciprocal %267 {approx = true} : vector<16x1xf32> -> vector<16x1xf32>
    %269 = vector.broadcast %268 : vector<16x1xf32> to vector<16x16xf32>
    %270 = arith.mulf %265, %269 : vector<16x16xf32>
    %271 = arith.truncf %270 : vector<16x16xf32> to vector<16x16xbf16>
    %272 = arith.truncf %254 : vector<16x16xf32> to vector<16x16xbf16>
    %cst_83 = arith.constant dense<0.000000e+00> : vector<16x16xf32>
    %273 = tpu.matmul %271, %272, %cst_83 {dimension_numbers = #tpu.dot_dimension_numbers<[1], [0], [0], [1], [0, 0, 1, 1], [], []>} : vector<16x16xbf16>, vector<16x16xbf16>, vector<16x16xf32> -> vector<16x16xf32>
    %274 = tpu.concatenate %251, %273 in 1 : vector<16x16xf32>, vector<16x16xf32> -> vector<16x32xf32>
    %275 = arith.truncf %274 : vector<16x32xf32> to vector<16x32xbf16>
    %c1_84 = arith.constant 1 : index
    %c0_85 = arith.constant 0 : index
    %c0_86 = arith.constant 0 : index
    %276 = vector.load %arg3[%c1_84, %c0_85, %c0_86] : memref<2x32x32xbf16, #tpu.memory_space<vmem>>, vector<1x32x32xbf16>
    %277 = vector.shape_cast %276 : vector<1x32x32xbf16> to vector<32x32xbf16>
    %cst_87 = arith.constant dense<0.000000e+00> : vector<16x32xf32>
    %278 = tpu.matmul %275, %277, %cst_87 {dimension_numbers = #tpu.dot_dimension_numbers<[1], [0], [0], [1], [0, 0, 1, 1], [], []>} : vector<16x32xbf16>, vector<32x32xbf16>, vector<16x32xf32> -> vector<16x32xf32>
    %279 = vector.shape_cast %188 : vector<32xf32> to vector<1x32xf32>
    %280 = vector.broadcast %279 : vector<1x32xf32> to vector<16x32xf32>
    %281 = arith.addf %278, %280 : vector<16x32xf32>
    %282 = arith.addf %180, %281 : vector<16x32xf32>
    %cst_88 = arith.constant dense<0.000000e+00> : vector<16xf32>
    %283 = vector.multi_reduction <add>, %282, %cst_88 [1] : vector<16x32xf32> to vector<16xf32>
    %284 = vector.shape_cast %283 : vector<16xf32> to vector<16x1xf32>
    %cst_89 = arith.constant 3.200000e+01 : f32
    %285 = vector.broadcast %cst_89 : f32 to vector<16x1xf32>
    %286 = arith.divf %284, %285 : vector<16x1xf32>
    %287 = vector.broadcast %286 : vector<16x1xf32> to vector<16x32xf32>
    %288 = arith.subf %282, %287 : vector<16x32xf32>
    %289 = vector.broadcast %286 : vector<16x1xf32> to vector<16x32xf32>
    %290 = arith.subf %282, %289 : vector<16x32xf32>
    %291 = arith.mulf %288, %290 : vector<16x32xf32>
    %cst_90 = arith.constant dense<0.000000e+00> : vector<16xf32>
    %292 = vector.multi_reduction <add>, %291, %cst_90 [1] : vector<16x32xf32> to vector<16xf32>
    %293 = vector.shape_cast %292 : vector<16xf32> to vector<16x1xf32>
    %cst_91 = arith.constant 3.200000e+01 : f32
    %294 = vector.broadcast %cst_91 : f32 to vector<16x1xf32>
    %295 = arith.divf %293, %294 : vector<16x1xf32>
    %296 = vector.broadcast %286 : vector<16x1xf32> to vector<16x32xf32>
    %297 = arith.subf %282, %296 : vector<16x32xf32>
    %cst_92 = arith.constant 9.99999974E-6 : f32
    %298 = vector.broadcast %cst_92 : f32 to vector<16x1xf32>
    %299 = arith.addf %295, %298 : vector<16x1xf32>
    %300 = math.rsqrt %299 : vector<16x1xf32>
    %301 = vector.broadcast %300 : vector<16x1xf32> to vector<16x32xf32>
    %302 = arith.mulf %297, %301 : vector<16x32xf32>
    %303 = vector.shape_cast %190 : vector<32xf32> to vector<1x32xf32>
    %304 = vector.broadcast %303 : vector<1x32xf32> to vector<16x32xf32>
    %305 = arith.mulf %302, %304 : vector<16x32xf32>
    %306 = vector.shape_cast %192 : vector<32xf32> to vector<1x32xf32>
    %307 = vector.broadcast %306 : vector<1x32xf32> to vector<16x32xf32>
    %308 = arith.addf %305, %307 : vector<16x32xf32>
    %309 = arith.truncf %308 : vector<16x32xf32> to vector<16x32xbf16>
    %c1_93 = arith.constant 1 : index
    %c0_94 = arith.constant 0 : index
    %c0_95 = arith.constant 0 : index
    %310 = vector.load %arg4[%c1_93, %c0_94, %c0_95] : memref<2x32x128xbf16, #tpu.memory_space<vmem>>, vector<1x32x128xbf16>
    %311 = vector.shape_cast %310 : vector<1x32x128xbf16> to vector<32x128xbf16>
    %cst_96 = arith.constant dense<0.000000e+00> : vector<16x128xf32>
    %312 = tpu.matmul %309, %311, %cst_96 {dimension_numbers = #tpu.dot_dimension_numbers<[1], [0], [0], [1], [0, 0, 1, 1], [], []>} : vector<16x32xbf16>, vector<32x128xbf16>, vector<16x128xf32> -> vector<16x128xf32>
    %313 = vector.shape_cast %194 : vector<128xf32> to vector<1x128xf32>
    %314 = vector.broadcast %313 : vector<1x128xf32> to vector<16x128xf32>
    %315 = arith.addf %312, %314 : vector<16x128xf32>
    %316 = arith.mulf %315, %315 : vector<16x128xf32>
    %317 = arith.mulf %315, %316 : vector<16x128xf32>
    %cst_97 = arith.constant 4.471500e-02 : f32
    %318 = vector.broadcast %cst_97 : f32 to vector<16x128xf32>
    %319 = arith.mulf %318, %317 : vector<16x128xf32>
    %320 = arith.addf %315, %319 : vector<16x128xf32>
    %cst_98 = arith.constant 0.797884583 : f32
    %321 = vector.broadcast %cst_98 : f32 to vector<16x128xf32>
    %322 = arith.mulf %321, %320 : vector<16x128xf32>
    %323 = math.tanh %322 : vector<16x128xf32>
    %cst_99 = arith.constant 1.000000e+00 : f32
    %324 = vector.broadcast %cst_99 : f32 to vector<16x128xf32>
    %325 = arith.addf %324, %323 : vector<16x128xf32>
    %cst_100 = arith.constant 5.000000e-01 : f32
    %326 = vector.broadcast %cst_100 : f32 to vector<16x128xf32>
    %327 = arith.mulf %326, %325 : vector<16x128xf32>
    %328 = arith.mulf %315, %327 : vector<16x128xf32>
    %329 = arith.truncf %328 : vector<16x128xf32> to vector<16x128xbf16>
    %c1_101 = arith.constant 1 : index
    %c0_102 = arith.constant 0 : index
    %c0_103 = arith.constant 0 : index
    %330 = vector.load %arg5[%c1_101, %c0_102, %c0_103] : memref<2x128x32xbf16, #tpu.memory_space<vmem>>, vector<1x128x32xbf16>
    %331 = vector.shape_cast %330 : vector<1x128x32xbf16> to vector<128x32xbf16>
    %cst_104 = arith.constant dense<0.000000e+00> : vector<16x32xf32>
    %332 = tpu.matmul %329, %331, %cst_104 {dimension_numbers = #tpu.dot_dimension_numbers<[1], [0], [0], [1], [0, 0, 1, 1], [], []>} : vector<16x128xbf16>, vector<128x32xbf16>, vector<16x32xf32> -> vector<16x32xf32>
    %333 = vector.shape_cast %196 : vector<32xf32> to vector<1x32xf32>
    %334 = vector.broadcast %333 : vector<1x32xf32> to vector<16x32xf32>
    %335 = arith.addf %332, %334 : vector<16x32xf32>
    %336 = arith.addf %282, %335 : vector<16x32xf32>
    %337 = vector.extract_strided_slice %336 {offsets = [7, 0], sizes = [1, 32], strides = [1, 1]} : vector<16x32xf32> to vector<1x32xf32>
    %338 = vector.extract_strided_slice %336 {offsets = [15, 0], sizes = [1, 32], strides = [1, 1]} : vector<16x32xf32> to vector<1x32xf32>
    %339 = tpu.concatenate %337, %338 in 0 : vector<1x32xf32>, vector<1x32xf32> -> vector<2x32xf32>
    %c32 = arith.constant 32 : index
    %c0_105 = arith.constant 0 : index
    %340 = vector.load %arg6[%c32, %c0_105] : memref<34x128xf32, #tpu.memory_space<vmem>>, vector<1x32xf32>
    %341 = vector.shape_cast %340 : vector<1x32xf32> to vector<32xf32>
    %c33 = arith.constant 33 : index
    %c0_106 = arith.constant 0 : index
    %342 = vector.load %arg6[%c33, %c0_106] : memref<34x128xf32, #tpu.memory_space<vmem>>, vector<1x32xf32>
    %343 = vector.shape_cast %342 : vector<1x32xf32> to vector<32xf32>
    %cst_107 = arith.constant dense<0.000000e+00> : vector<2xf32>
    %344 = vector.multi_reduction <add>, %339, %cst_107 [1] : vector<2x32xf32> to vector<2xf32>
    %345 = vector.shape_cast %344 : vector<2xf32> to vector<2x1xf32>
    %cst_108 = arith.constant 3.200000e+01 : f32
    %346 = vector.broadcast %cst_108 : f32 to vector<2x1xf32>
    %347 = arith.divf %345, %346 : vector<2x1xf32>
    %348 = vector.broadcast %347 : vector<2x1xf32> to vector<2x32xf32>
    %349 = arith.subf %339, %348 : vector<2x32xf32>
    %350 = vector.broadcast %347 : vector<2x1xf32> to vector<2x32xf32>
    %351 = arith.subf %339, %350 : vector<2x32xf32>
    %352 = arith.mulf %349, %351 : vector<2x32xf32>
    %cst_109 = arith.constant dense<0.000000e+00> : vector<2xf32>
    %353 = vector.multi_reduction <add>, %352, %cst_109 [1] : vector<2x32xf32> to vector<2xf32>
    %354 = vector.shape_cast %353 : vector<2xf32> to vector<2x1xf32>
    %cst_110 = arith.constant 3.200000e+01 : f32
    %355 = vector.broadcast %cst_110 : f32 to vector<2x1xf32>
    %356 = arith.divf %354, %355 : vector<2x1xf32>
    %357 = vector.broadcast %347 : vector<2x1xf32> to vector<2x32xf32>
    %358 = arith.subf %339, %357 : vector<2x32xf32>
    %cst_111 = arith.constant 9.99999974E-6 : f32
    %359 = vector.broadcast %cst_111 : f32 to vector<2x1xf32>
    %360 = arith.addf %356, %359 : vector<2x1xf32>
    %361 = math.rsqrt %360 : vector<2x1xf32>
    %362 = vector.broadcast %361 : vector<2x1xf32> to vector<2x32xf32>
    %363 = arith.mulf %358, %362 : vector<2x32xf32>
    %364 = vector.shape_cast %341 : vector<32xf32> to vector<1x32xf32>
    %365 = vector.broadcast %364 : vector<1x32xf32> to vector<2x32xf32>
    %366 = arith.mulf %363, %365 : vector<2x32xf32>
    %367 = vector.shape_cast %343 : vector<32xf32> to vector<1x32xf32>
    %368 = vector.broadcast %367 : vector<1x32xf32> to vector<2x32xf32>
    %369 = arith.addf %366, %368 : vector<2x32xf32>
    %370 = arith.truncf %369 : vector<2x32xf32> to vector<2x32xbf16>
    %c0_112 = arith.constant 0 : index
    %c0_113 = arith.constant 0 : index
    %371 = vector.load %arg1[%c0_112, %c0_113] : memref<128x32xbf16, #tpu.memory_space<vmem>>, vector<128x32xbf16>
    %cst_114 = arith.constant dense<0.000000e+00> : vector<2x128xf32>
    %372 = tpu.matmul %370, %371, %cst_114 {dimension_numbers = #tpu.dot_dimension_numbers<[1], [1], [0], [0], [0, 0, 1, 0], [], []>} : vector<2x32xbf16>, vector<128x32xbf16>, vector<2x128xf32> -> vector<2x128xf32>
    %c0_115 = arith.constant 0 : index
    %c0_116 = arith.constant 0 : index
    %373 = vector.load %arg7[%c0_115, %c0_116] : memref<2x128xf32, #tpu.memory_space<vmem>>, vector<2x128xf32>
    tpu.vector_store %arg7[%c0_115, %c0_116], %372 {strides = array<i32>} : memref<2x128xf32, #tpu.memory_space<vmem>>, vector<2x128xf32>,
    return
  }
}

</mosaic_0001>

<llo_original>
// kernel: gpt_forward.1
$region0: #{gpt_forward.1}
  #allocation0 [shape = 'u32[]', space=smem, size = 0x4, offset = 0x4, fixed_abs, tag = 'smem constant byte address 0x4 - core index']
  #allocation1 [shape = 'u32[72,128]{1,0:T(1,128)}', space=vmem, size = 0x9000, scoped, tag = 'internal scratch']
  %s0 = inlined_call_operand.vmem [shape: s32[16,1], index: 0, kind: input, shape index: {}]
  %s1 = inlined_call_operand.vmem [shape: bf16[128,32], index: 1, kind: input, shape index: {}]
  %s2 = inlined_call_operand.vmem [shape: bf16[2,32,96], index: 2, kind: input, shape index: {}]
  %s3 = inlined_call_operand.vmem [shape: bf16[2,32,32], index: 3, kind: input, shape index: {}]
  %s4 = inlined_call_operand.vmem [shape: bf16[2,32,128], index: 4, kind: input, shape index: {}]
  %s5 = inlined_call_operand.vmem [shape: bf16[2,128,32], index: 5, kind: input, shape index: {}]
  %s6 = inlined_call_operand.vmem [shape: f32[34,128], index: 6, kind: input, shape index: {}]
  %s7 = inlined_call_operand.hbm [shape: f32[2,128], index: 7, kind: output, shape index: {}]
  %s8 = sld [smem:[#allocation0]]
  $region38: #{gpt_forward.1} parent=0
    _
  %s10 = ssub.s32 1, %s8
  %s11 = scalar_select 0, %s10, %s8
  $region1: #{gpt_forward.1} parent=0
    #allocation2 [shape = 'u8[1024]{0}', space=vmem, size = 0x400, scoped, tag = 'output window, operand 0, single buffered']
    #allocation3 [shape = 's32[1]{0}', space=sflag, size = 0x4, scoped, tag = 'scoped memory for gpt_forward.1']
    %12 = vsyncpa [#allocation3], 0
    // Predicated region
    $region2: #{gpt_forward.1} parent=1 // pred_check
      _
    $region3: #{gpt_forward.1} parent=1 // pred_check_branch
      %14 = sbr.rel (0) target = $region5
    $region4: #{gpt_forward.1} parent=1 // pred_region
      _
    $region5: #{gpt_forward.1} parent=1 // pred_fallthru
      _
    // Predicated region
    $region6: #{gpt_forward.1} parent=1 // pred_check
      _
    $region7: #{gpt_forward.1} parent=1 // pred_check_branch
      %16 = sbr.rel (0) target = $region9
    $region8: #{gpt_forward.1} parent=1 // pred_region
      _
    $region9: #{gpt_forward.1} parent=1 // pred_fallthru
      _
    // Predicated region
    $region10: #{gpt_forward.1} parent=1 // pred_check
      _
    $region11: #{gpt_forward.1} parent=1 // pred_check_branch
      %18 = sbr.rel (0) target = $region13
    $region12: #{gpt_forward.1} parent=1 // pred_region
      _
    $region13: #{gpt_forward.1} parent=1 // pred_fallthru
      _
    // Predicated region
    $region14: #{gpt_forward.1} parent=1 // pred_check
      _
    $region15: #{gpt_forward.1} parent=1 // pred_check_branch
      %20 = sbr.rel (0) target = $region17
    $region16: #{gpt_forward.1} parent=1 // pred_region
      _
    $region17: #{gpt_forward.1} parent=1 // pred_fallthru
      _
    // Predicated region
    $region18: #{gpt_forward.1} parent=1 // pred_check
      _
    $region19: #{gpt_forward.1} parent=1 // pred_check_branch
      %22 = sbr.rel (0) target = $region21
    $region20: #{gpt_forward.1} parent=1 // pred_region
      _
    $region21: #{gpt_forward.1} parent=1 // pred_fallthru
      _
    // Predicated region
    $region22: #{gpt_forward.1} parent=1 // pred_check
      _
    $region23: #{gpt_forward.1} parent=1 // pred_check_branch
      %24 = sbr.rel (0) target = $region25
    $region24: #{gpt_forward.1} parent=1 // pred_region
      _
    $region25: #{gpt_forward.1} parent=1 // pred_fallthru
      _
    // Predicated region
    $region26: #{gpt_forward.1} parent=1 // pred_check
      _
    $region27: #{gpt_forward.1} parent=1 // pred_check_branch
      %26 = sbr.rel (0) target = $region29
    $region28: #{gpt_forward.1} parent=1 // pred_region
      _
    $region29: #{gpt_forward.1} parent=1 // pred_fallthru
      _
    %v28 = vld [vmem:[%s0] sm:$0xff]
    %v29 = vld [vmem:[%s0 + $0x8] sm:$0xff]
    %v30 = vlaneseq
    %v31 = vand.u32 %v30, 127
    %32 = vset.pattern.permute.xlu0 0
    %33 = vperm.xlu0 %32, %v28
    %v34 = vpop.permute.xlu0 %33
    %35 = vset.pattern.permute.xlu0 0
    %36 = vperm.xlu0 %35, %v29
    %v37 = vpop.permute.xlu0 %36
    %vm38 = vcmp.eq.s32.totalorder %v31, %v34
    %vm39 = vcmp.eq.s32.totalorder %v31, %v37
    %v40 = vsel %vm38, 1, 0
    %v41 = vsel %vm39, 1, 0
    %v42 = vcvt.s32.f32 %v40
    %v43 = vcvt.s32.f32 %v41
    %v44 = vpack.c.bf16 %v43, %v42
    %v45 = vld [vmem:[%s1] sm:$0xf]
    %v46 = vld [vmem:[%s1 + $0x4] sm:$0xf]
    %v47 = vld [vmem:[%s1 + $0x8] sm:$0xf]
    %v48 = vld [vmem:[%s1 + $0xc] sm:$0xf]
    %v49 = vld [vmem:[%s1 + $0x10] sm:$0xf]
    %v50 = vld [vmem:[%s1 + $0x14] sm:$0xf]
    %v51 = vld [vmem:[%s1 + $0x18] sm:$0xf]
    %v52 = vld [vmem:[%s1 + $0x1c] sm:$0xf]
    %v53 = vld [vmem:[%s1 + $0x20] sm:$0xf]
    %v54 = vld [vmem:[%s1 + $0x24] sm:$0xf]
    %v55 = vld [vmem:[%s1 + $0x28] sm:$0xf]
    %v56 = vld [vmem:[%s1 + $0x2c] sm:$0xf]
    %v57 = vld [vmem:[%s1 + $0x30] sm:$0xf]
    %v58 = vld [vmem:[%s1 + $0x34] sm:$0xf]
    %v59 = vld [vmem:[%s1 + $0x38] sm:$0xf]
    %v60 = vld [vmem:[%s1 + $0x3c] sm:$0xf]
    %v61 = vld [vmem:[%s6 + $0x10] sm:$0xff]
    %v78 = vunpack.c.l.b16 %v45
    %v79 = vunpack.c.l.b16 %v46
    %v80 = vunpack.c.l.b16 %v47
    %v81 = vunpack.c.l.b16 %v48
    %v82 = vunpack.c.l.b16 %v49
    %v83 = vunpack.c.l.b16 %v50
    %v84 = vunpack.c.l.b16 %v51
    %v85 = vunpack.c.l.b16 %v52
    %v86 = vunpack.c.l.b16 %v53
    %v87 = vunpack.c.l.b16 %v54
    %v88 = vunpack.c.l.b16 %v55
    %v89 = vunpack.c.l.b16 %v56
    %v90 = vunpack.c.l.b16 %v57
    %v91 = vunpack.c.l.b16 %v58
    %v92 = vunpack.c.l.b16 %v59
    %v93 = vunpack.c.l.b16 %v60
    %v94 = vpack.c.b16 %v79, %v78
    %v95 = vpack.c.b16 %v81, %v80
    %v96 = vpack.c.b16 %v83, %v82
    %v97 = vpack.c.b16 %v85, %v84
    %v98 = vpack.c.b16 %v87, %v86
    %v99 = vpack.c.b16 %v89, %v88
    %v100 = vpack.c.b16 %v91, %v90
    %v101 = vpack.c.b16 %v93, %v92
    %110 = vmatpush.bf16.msra.mxu0 %v101
    %111 = vmatpush.bf16.msra.mxu0 %v100
    %112 = vmatpush.bf16.msra.mxu0 %v99
    %113 = vmatpush.bf16.msra.mxu0 %v98
    %114 = vmatpush.bf16.msra.mxu0 %v97
    %115 = vmatpush.bf16.msra.mxu0 %v96
    %116 = vmatpush.bf16.msra.mxu0 %v95
    %117 = vmatpush.bf16.msra.mxu0 %v94
    %118 = vmatmul.bf16.gmra.mxu0 %v44
    %v119 = vpop.f32.mrf.mxu0
    %v120 = vadd.f32 %v61, %v119
    %v121 = vpop.f32.mrf.mxu0
    %v122 = vadd.f32 %v61, %v121
    %123 = vdwg.mxu0
    %v124 = vlaneseq
    %v125 = vshrl.u32 %v124, 7
    %v126 = vadd.s32 %v125, 8
    %vm127 = vcmp.le.s32.totalorder %v31, %v125
    %vm128 = vcmp.le.s32.totalorder %v31, %v126
    %vm129 = vcmp.ge.s32.totalorder %v125, 8
    %vm130 = vcmp.ge.s32.totalorder %v126, 8
    %vm131 = vcmp.lt.s32.totalorder %v31, 8
    %vm132 = vmand %vm129, %vm131
    %vm133 = vmand %vm130, %vm131
    %vm134 = vmxor %vm132, 1
    %vm135 = vmxor %vm133, 1
    %vm136 = vmand %vm127, %vm134
    %vm137 = vmand %vm128, %vm135
    %v138 = vsel %vm136, 0.0, -1e+30
    %v139 = vsel %vm137, 0.0, -1e+30
    %v140 = vld [vmem:[%s6] sm:$0x1]
    %v141 = vld [vmem:[%s6 + $0x1] sm:$0x1]
    %v142 = vld [vmem:[%s6 + $0x2] sm:$0x1]
    %v143 = vld [vmem:[%s6 + $0x3] sm:$0x1]
    %v144 = vld [vmem:[%s6 + $0x4] sm:$0x1]
    %v145 = vld [vmem:[%s6 + $0x5] sm:$0x1]
    %v146 = vld [vmem:[%s6 + $0x6] sm:$0x1]
    %v147 = vld [vmem:[%s6 + $0x7] sm:$0x1]
    %vm148 = vcmask 261120
    %v149 = vsel %vm148, %v120, 0.0
    %150 = vadd.xlane.f32.xlu0 %v149
    %v151 = vpop.xlane.xlu0 %150
    %v152 = vsel %vm148, %v122, 0.0
    %153 = vadd.xlane.f32.xlu0 %v152
    %v154 = vpop.xlane.xlu0 %153
    %v155 = vrcp.pop 32.0
    %v156 = vmul.f32 32.0, %v155
    %v157 = vsub.f32 1.0, %v156
    %v158 = vmul.f32 %v155, %v157
    %v159 = vadd.f32 %v155, %v158
    %vm160 = vweird.f32 %v155
    %v161 = vsel %vm160, %v155, %v159
    %v162 = vmul.f32 %v151, %v161
    %v163 = vmul.f32 %v154, %v161
    %v164 = vsub.f32 %v120, %v162
    %v165 = vsub.f32 %v122, %v163
    %v166 = vmul.f32 %v164, %v164
    %v167 = vmul.f32 %v165, %v165
    %v168 = vsel %vm148, %v166, 0.0
    %169 = vadd.xlane.f32.xlu0 %v168
    %v170 = vpop.xlane.xlu0 %169
    %v171 = vsel %vm148, %v167, 0.0
    %172 = vadd.xlane.f32.xlu0 %v171
    %v173 = vpop.xlane.xlu0 %172
    %v174 = vmul.f32 %v170, %v161
    %v175 = vmul.f32 %v173, %v161
    %v176 = vadd.f32 %v174, 1e-05
    %v177 = vadd.f32 %v175, 1e-05
    %v178 = vrsqrt.pop %v176
    %v179 = vmul.f32 %v178, %v176
    %v180 = vmul.f32 %v179, %v178
    %v181 = vmul.f32 0.5, %v180
    %v182 = vsub.f32 1.5, %v181
    %v183 = vmul.f32 %v178, %v182
    %vm184 = vweird.f32 %v176
    %vm185 = vweird.f32 %v178
    %vm186 = vmor %vm184, %vm185
    %v187 = vsel %vm186, %v178, %v183
    %v188 = vrsqrt.pop %v177
    %v189 = vmul.f32 %v188, %v177
    %v190 = vmul.f32 %v189, %v188
    %v191 = vmul.f32 0.5, %v190
    %v192 = vsub.f32 1.5, %v191
    %v193 = vmul.f32 %v188, %v192
    %vm194 = vweird.f32 %v177
    %vm195 = vweird.f32 %v188
    %vm196 = vmor %vm194, %vm195
    %v197 = vsel %vm196, %v188, %v193
    %v198 = vmul.f32 %v164, %v187
    %v199 = vmul.f32 %v165, %v197
    %v200 = vperm.slane %v140, 0
    %v201 = vmul.f32 %v198, %v200
    %v202 = vmul.f32 %v199, %v200
    %v203 = vperm.slane %v141, 0
    %v204 = vadd.f32 %v201, %v203
    %v205 = vadd.f32 %v202, %v203
    %v206 = vpack.c.bf16 %v205, %v204
    %v207 = vld [vmem:[%s2] sm:$0xf]
    %v208 = vld [vmem:[%s2 + $0x4] sm:$0xf]
    %v209 = vld [vmem:[%s2 + $0x8] sm:$0xf]
    %v210 = vld [vmem:[%s2 + $0xc] sm:$0xf]
    %v211 = vperm.slane %v142, 0
    %v216 = vunpack.c.l.b16 %v207
    %v217 = vunpack.c.l.b16 %v208
    %v218 = vunpack.c.l.b16 %v209
    %v219 = vunpack.c.l.b16 %v210
    %v220 = vpack.c.b16 %v217, %v216
    %v221 = vpack.c.b16 %v219, %v218
    %v225 = vsel %vm148, %v206, 0
    %227 = vmatpush.bf16.msra.mxu0 0
    %228 = vmatpush.bf16.msra.mxu0 0
    %229 = vmatpush.bf16.msra.mxu0 0
    %230 = vmatpush.bf16.msra.mxu0 0
    %231 = vmatpush.bf16.msra.mxu0 0
    %232 = vmatpush.bf16.msra.mxu0 0
    %233 = vmatpush.bf16.msra.mxu0 %v221
    %234 = vmatpush.bf16.msra.mxu0 %v220
    %235 = vmatmul.bf16.gmra.mxu0 %v225
    %v236 = vpop.f32.mrf.mxu0
    %v237 = vadd.f32 %v211, %v236
    %v238 = vpop.f32.mrf.mxu0
    %v239 = vadd.f32 %v211, %v238
    %240 = vdwg.mxu0
    %v241 = vpack.c.bf16 %v239, %v237
    %243 = vrot.lane.b32.xlu0 %v241, 96
    %v244 = vpop.permute.xlu0 %243
    %vm245 = vcmask 130048
    %v247 = vsel %vm245, %v241, 0
    %v250 = vsel %vm245, %v244, 0
    %252 = vmatpush.bf16.xpose.msra.mxu0 0
    %253 = vmatpush.bf16.xpose.msra.mxu0 0
    %254 = vmatpush.bf16.xpose.msra.mxu0 0
    %255 = vmatpush.bf16.xpose.msra.mxu0 0
    %256 = vmatpush.bf16.xpose.msra.mxu0 0
    %257 = vmatpush.bf16.xpose.msra.mxu0 0
    %258 = vmatpush.bf16.xpose.msra.mxu0 0
    %259 = vmatpush.bf16.xpose.msra.mxu0 %v250
    %260 = vmatmul.bf16.gmra.mxu0 %v247
    %v261 = vpop.f32.mrf.mxu0
    %v262 = vadd.f32 0.0, %v261
    %v263 = vpop.f32.mrf.mxu0
    %v264 = vadd.f32 0.0, %v263
    %265 = vdwg.mxu0
    %v266 = vmul.f32 %v262, 0.25
    %v267 = vmul.f32 %v264, 0.25
    %v268 = vadd.f32 %v266, %v138
    %v269 = vadd.f32 %v267, %v139
    %v270 = vsel %vm245, %v268, -inf
    %271 = vmax.xlane.f32.xlu0 %v270
    %v272 = vpop.xlane.xlu0 %271
    %v273 = vsel %vm245, %v269, -inf
    %274 = vmax.xlane.f32.xlu0 %v273
    %v275 = vpop.xlane.xlu0 %274
    %v276 = vsub.f32 %v268, %v272
    %v277 = vsub.f32 %v269, %v275
    %v278 = vmul.f32 %v276, 1.442695
    %v279 = vpow.pop %v278
    %v280 = vmul.f32 %v277, 1.442695
    %v281 = vpow.pop %v280
    %v282 = vsel %vm245, %v279, 0.0
    %283 = vadd.xlane.f32.xlu0 %v282
    %v284 = vpop.xlane.xlu0 %283
    %v285 = vsel %vm245, %v281, 0.0
    %286 = vadd.xlane.f32.xlu0 %v285
    %v287 = vpop.xlane.xlu0 %286
    %v288 = vrcp.pop %v284
    %v289 = vrcp.pop %v287
    %v290 = vmul.f32 %v279, %v288
    %v291 = vmul.f32 %v281, %v289
    %v292 = vpack.c.bf16 %v291, %v290
    %293 = vrot.lane.b32.xlu0 %v241, 64
    %v294 = vpop.permute.xlu0 %293
    %v297 = vsel %vm245, %v292, 0
    %299 = vmatpush.bf16.msra.mxu0 0
    %300 = vmatpush.bf16.msra.mxu0 0
    %301 = vmatpush.bf16.msra.mxu0 0
    %302 = vmatpush.bf16.msra.mxu0 0
    %303 = vmatpush.bf16.msra.mxu0 0
    %304 = vmatpush.bf16.msra.mxu0 0
    %305 = vmatpush.bf16.msra.mxu0 0
    %306 = vmatpush.bf16.msra.mxu0 %v294
    %307 = vmatmul.bf16.gmra.mxu0 %v297
    %v308 = vpop.f32.mrf.mxu0
    %v309 = vadd.f32 0.0, %v308
    %v310 = vpop.f32.mrf.mxu0
    %v311 = vadd.f32 0.0, %v310
    %312 = vdwg.mxu0
    %313 = vrot.lane.b32.xlu0 %v241, 112
    %v314 = vpop.permute.xlu0 %313
    %315 = vrot.lane.b32.xlu0 %v241, 80
    %v316 = vpop.permute.xlu0 %315
    %v318 = vsel %vm245, %v314, 0
    %v321 = vsel %vm245, %v316, 0
    %323 = vmatpush.bf16.xpose.msra.mxu0 0
    %324 = vmatpush.bf16.xpose.msra.mxu0 0
    %325 = vmatpush.bf16.xpose.msra.mxu0 0
    %326 = vmatpush.bf16.xpose.msra.mxu0 0
    %327 = vmatpush.bf16.xpose.msra.mxu0 0
    %328 = vmatpush.bf16.xpose.msra.mxu0 0
    %329 = vmatpush.bf16.xpose.msra.mxu0 0
    %330 = vmatpush.bf16.xpose.msra.mxu0 %v321
    %331 = vmatmul.bf16.gmra.mxu0 %v318
    %v332 = vpop.f32.mrf.mxu0
    %v333 = vadd.f32 0.0, %v332
    %v334 = vpop.f32.mrf.mxu0
    %v335 = vadd.f32 0.0, %v334
    %336 = vdwg.mxu0
    %v337 = vmul.f32 %v333, 0.25
    %v338 = vmul.f32 %v335, 0.25
    %v339 = vadd.f32 %v337, %v138
    %v340 = vadd.f32 %v338, %v139
    %v341 = vsel %vm245, %v339, -inf
    %342 = vmax.xlane.f32.xlu0 %v341
    %v343 = vpop.xlane.xlu0 %342
    %v344 = vsel %vm245, %v340, -inf
    %345 = vmax.xlane.f32.xlu0 %v344
    %v346 = vpop.xlane.xlu0 %345
    %v347 = vsub.f32 %v339, %v343
    %v348 = vsub.f32 %v340, %v346
    %v349 = vmul.f32 %v347, 1.442695
    %v350 = vpow.pop %v349
    %v351 = vmul.f32 %v348, 1.442695
    %v352 = vpow.pop %v351
    %v353 = vsel %vm245, %v350, 0.0
    %354 = vadd.xlane.f32.xlu0 %v353
    %v355 = vpop.xlane.xlu0 %354
    %v356 = vsel %vm245, %v352, 0.0
    %357 = vadd.xlane.f32.xlu0 %v356
    %v358 = vpop.xlane.xlu0 %357
    %v359 = vrcp.pop %v355
    %v360 = vrcp.pop %v358
    %v361 = vmul.f32 %v350, %v359
    %v362 = vmul.f32 %v352, %v360
    %v363 = vpack.c.bf16 %v362, %v361
    %364 = vrot.lane.b32.xlu0 %v241, 48
    %v365 = vpop.permute.xlu0 %364
    %v368 = vsel %vm245, %v363, 0
    %370 = vmatpush.bf16.msra.mxu0 0
    %371 = vmatpush.bf16.msra.mxu0 0
    %372 = vmatpush.bf16.msra.mxu0 0
    %373 = vmatpush.bf16.msra.mxu0 0
    %374 = vmatpush.bf16.msra.mxu0 0
    %375 = vmatpush.bf16.msra.mxu0 0
    %376 = vmatpush.bf16.msra.mxu0 0
    %377 = vmatpush.bf16.msra.mxu0 %v365
    %378 = vmatmul.bf16.gmra.mxu0 %v368
    %v379 = vpop.f32.mrf.mxu0
    %v380 = vadd.f32 0.0, %v379
    %v381 = vpop.f32.mrf.mxu0
    %v382 = vadd.f32 0.0, %v381
    %383 = vdwg.mxu0
    %386 = vrot.lane.b32.xlu0 %v380, 16
    %v387 = vpop.permute.xlu0 %386
    %388 = vrot.lane.b32.xlu0 %v382, 16
    %v389 = vpop.permute.xlu0 %388
    %v392 = vsel %vm245, %v309, %v387
    %v393 = vsel %vm245, %v311, %v389
    %v394 = vpack.c.bf16 %v393, %v392
    %v395 = vld [vmem:[%s3] sm:$0xf]
    %v396 = vld [vmem:[%s3 + $0x4] sm:$0xf]
    %v397 = vld [vmem:[%s3 + $0x8] sm:$0xf]
    %v398 = vld [vmem:[%s3 + $0xc] sm:$0xf]
    %v399 = vperm.slane %v143, 0
    %v404 = vunpack.c.l.b16 %v395
    %v405 = vunpack.c.l.b16 %v396
    %v406 = vunpack.c.l.b16 %v397
    %v407 = vunpack.c.l.b16 %v398
    %v408 = vpack.c.b16 %v405, %v404
    %v409 = vpack.c.b16 %v407, %v406
    %v413 = vsel %vm148, %v394, 0
    %415 = vmatpush.bf16.msra.mxu0 0
    %416 = vmatpush.bf16.msra.mxu0 0
    %417 = vmatpush.bf16.msra.mxu0 0
    %418 = vmatpush.bf16.msra.mxu0 0
    %419 = vmatpush.bf16.msra.mxu0 0
    %420 = vmatpush.bf16.msra.mxu0 0
    %421 = vmatpush.bf16.msra.mxu0 %v409
    %422 = vmatpush.bf16.msra.mxu0 %v408
    %423 = vmatmul.bf16.gmra.mxu0 %v413
    %v424 = vpop.f32.mrf.mxu0
    %v425 = vadd.f32 %v399, %v424
    %v426 = vpop.f32.mrf.mxu0
    %v427 = vadd.f32 %v399, %v426
    %428 = vdwg.mxu0
    %v429 = vadd.f32 %v120, %v425
    %v430 = vadd.f32 %v122, %v427
    %v431 = vsel %vm148, %v429, 0.0
    %432 = vadd.xlane.f32.xlu0 %v431
    %v433 = vpop.xlane.xlu0 %432
    %v434 = vsel %vm148, %v430, 0.0
    %435 = vadd.xlane.f32.xlu0 %v434
    %v436 = vpop.xlane.xlu0 %435
    %v437 = vmul.f32 %v433, %v161
    %v438 = vmul.f32 %v436, %v161
    %v439 = vsub.f32 %v429, %v437
    %v440 = vsub.f32 %v430, %v438
    %v441 = vmul.f32 %v439, %v439
    %v442 = vmul.f32 %v440, %v440
    %v443 = vsel %vm148, %v441, 0.0
    %444 = vadd.xlane.f32.xlu0 %v443
    %v445 = vpop.xlane.xlu0 %444
    %v446 = vsel %vm148, %v442, 0.0
    %447 = vadd.xlane.f32.xlu0 %v446
    %v448 = vpop.xlane.xlu0 %447
    %v449 = vmul.f32 %v445, %v161
    %v450 = vmul.f32 %v448, %v161
    %v451 = vadd.f32 %v449, 1e-05
    %v452 = vadd.f32 %v450, 1e-05
    %v453 = vrsqrt.pop %v451
    %v454 = vmul.f32 %v453, %v451
    %v455 = vmul.f32 %v454, %v453
    %v456 = vmul.f32 0.5, %v455
    %v457 = vsub.f32 1.5, %v456
    %v458 = vmul.f32 %v453, %v457
    %vm459 = vweird.f32 %v451
    %vm460 = vweird.f32 %v453
    %vm461 = vmor %vm459, %vm460
    %v462 = vsel %vm461, %v453, %v458
    %v463 = vrsqrt.pop %v452
    %v464 = vmul.f32 %v463, %v452
    %v465 = vmul.f32 %v464, %v463
    %v466 = vmul.f32 0.5, %v465
    %v467 = vsub.f32 1.5, %v466
    %v468 = vmul.f32 %v463, %v467
    %vm469 = vweird.f32 %v452
    %vm470 = vweird.f32 %v463
    %vm471 = vmor %vm469, %vm470
    %v472 = vsel %vm471, %v463, %v468
    %v473 = vmul.f32 %v439, %v462
    %v474 = vmul.f32 %v440, %v472
    %v475 = vperm.slane %v144, 0
    %v476 = vmul.f32 %v473, %v475
    %v477 = vmul.f32 %v474, %v475
    %v478 = vperm.slane %v145, 0
    %v479 = vadd.f32 %v476, %v478
    %v480 = vadd.f32 %v477, %v478
    %v481 = vpack.c.bf16 %v480, %v479
    %v482 = vld [vmem:[%s4] sm:$0xf]
    %v483 = vld [vmem:[%s4 + $0x4] sm:$0xf]
    %v484 = vld [vmem:[%s4 + $0x8] sm:$0xf]
    %v485 = vld [vmem:[%s4 + $0xc] sm:$0xf]
    %v486 = vperm.slane %v146, 0
    %v491 = vunpack.c.l.b16 %v482
    %v492 = vunpack.c.l.b16 %v483
    %v493 = vunpack.c.l.b16 %v484
    %v494 = vunpack.c.l.b16 %v485
    %v495 = vpack.c.b16 %v492, %v491
    %v496 = vpack.c.b16 %v494, %v493
    %v500 = vsel %vm148, %v481, 0
    %502 = vmatpush.bf16.msra.mxu0 0
    %503 = vmatpush.bf16.msra.mxu0 0
    %504 = vmatpush.bf16.msra.mxu0 0
    %505 = vmatpush.bf16.msra.mxu0 0
    %506 = vmatpush.bf16.msra.mxu0 0
    %507 = vmatpush.bf16.msra.mxu0 0
    %508 = vmatpush.bf16.msra.mxu0 %v496
    %509 = vmatpush.bf16.msra.mxu0 %v495
    %510 = vmatmul.bf16.gmra.mxu0 %v500
    %v511 = vpop.f32.mrf.mxu0
    %v512 = vadd.f32 %v486, %v511
    %v513 = vpop.f32.mrf.mxu0
    %v514 = vadd.f32 %v486, %v513
    %515 = vdwg.mxu0
    %v516 = vmul.f32 %v512, %v512
    %v517 = vmul.f32 %v514, %v514
    %v518 = vmul.f32 %v512, %v516
    %v519 = vmul.f32 %v514, %v517
    %v520 = vmul.f32 %v518, 0.044715
    %v521 = vmul.f32 %v519, 0.044715
    %v522 = vadd.f32 %v512, %v520
    %v523 = vadd.f32 %v514, %v521
    %v524 = vmul.f32 %v522, 0.7978846
    %v525 = vmul.f32 %v523, 0.7978846
    %v526 = vtanh.pop %v524
    %v527 = vtanh.pop %v525
    %v528 = vadd.f32 %v526, 1.0
    %v529 = vadd.f32 %v527, 1.0
    %v530 = vmul.f32 %v528, 0.5
    %v531 = vmul.f32 %v529, 0.5
    %v532 = vmul.f32 %v512, %v530
    %v533 = vmul.f32 %v514, %v531
    %v534 = vpack.c.bf16 %v533, %v532
    %v535 = vld [vmem:[%s5] sm:$0xf]
    %v536 = vld [vmem:[%s5 + $0x4] sm:$0xf]
    %v537 = vld [vmem:[%s5 + $0x8] sm:$0xf]
    %v538 = vld [vmem:[%s5 + $0xc] sm:$0xf]
    %v539 = vld [vmem:[%s5 + $0x10] sm:$0xf]
    %v540 = vld [vmem:[%s5 + $0x14] sm:$0xf]
    %v541 = vld [vmem:[%s5 + $0x18] sm:$0xf]
    %v542 = vld [vmem:[%s5 + $0x1c] sm:$0xf]
    %v543 = vld [vmem:[%s5 + $0x20] sm:$0xf]
    %v544 = vld [vmem:[%s5 + $0x24] sm:$0xf]
    %v545 = vld [vmem:[%s5 + $0x28] sm:$0xf]
    %v546 = vld [vmem:[%s5 + $0x2c] sm:$0xf]
    %v547 = vld [vmem:[%s5 + $0x30] sm:$0xf]
    %v548 = vld [vmem:[%s5 + $0x34] sm:$0xf]
    %v549 = vld [vmem:[%s5 + $0x38] sm:$0xf]
    %v550 = vld [vmem:[%s5 + $0x3c] sm:$0xf]
    %v551 = vperm.slane %v147, 0
    %v568 = vunpack.c.l.b16 %v535
    %v569 = vunpack.c.l.b16 %v536
    %v570 = vunpack.c.l.b16 %v537
    %v571 = vunpack.c.l.b16 %v538
    %v572 = vunpack.c.l.b16 %v539
    %v573 = vunpack.c.l.b16 %v540
    %v574 = vunpack.c.l.b16 %v541
    %v575 = vunpack.c.l.b16 %v542
    %v576 = vunpack.c.l.b16 %v543
    %v577 = vunpack.c.l.b16 %v544
    %v578 = vunpack.c.l.b16 %v545
    %v579 = vunpack.c.l.b16 %v546
    %v580 = vunpack.c.l.b16 %v547
    %v581 = vunpack.c.l.b16 %v548
    %v582 = vunpack.c.l.b16 %v549
    %v583 = vunpack.c.l.b16 %v550
    %v584 = vpack.c.b16 %v569, %v568
    %v585 = vpack.c.b16 %v571, %v570
    %v586 = vpack.c.b16 %v573, %v572
    %v587 = vpack.c.b16 %v575, %v574
    %v588 = vpack.c.b16 %v577, %v576
    %v589 = vpack.c.b16 %v579, %v578
    %v590 = vpack.c.b16 %v581, %v580
    %v591 = vpack.c.b16 %v583, %v582
    %600 = vmatpush.bf16.msra.mxu0 %v591
    %601 = vmatpush.bf16.msra.mxu0 %v590
    %602 = vmatpush.bf16.msra.mxu0 %v589
    %603 = vmatpush.bf16.msra.mxu0 %v588
    %604 = vmatpush.bf16.msra.mxu0 %v587
    %605 = vmatpush.bf16.msra.mxu0 %v586
    %606 = vmatpush.bf16.msra.mxu0 %v585
    %607 = vmatpush.bf16.msra.mxu0 %v584
    %608 = vmatmul.bf16.gmra.mxu0 %v534
    %v609 = vpop.f32.mrf.mxu0
    %v610 = vadd.f32 %v551, %v609
    %v611 = vpop.f32.mrf.mxu0
    %v612 = vadd.f32 %v551, %v611
    %613 = vdwg.mxu0
    %v614 = vadd.f32 %v429, %v610
    %v615 = vadd.f32 %v430, %v612
    %v616 = vld [vmem:[%s6 + $0x8] sm:$0x1]
    %v617 = vld [vmem:[%s6 + $0x9] sm:$0x1]
    %v618 = vld [vmem:[%s6 + $0xa] sm:$0x1]
    %v619 = vld [vmem:[%s6 + $0xb] sm:$0x1]
    %v620 = vld [vmem:[%s6 + $0xc] sm:$0x1]
    %v621 = vld [vmem:[%s6 + $0xd] sm:$0x1]
    %v622 = vld [vmem:[%s6 + $0xe] sm:$0x1]
    %v623 = vld [vmem:[%s6 + $0xf] sm:$0x1]
    %v624 = vsel %vm148, %v614, 0.0
    %625 = vadd.xlane.f32.xlu0 %v624
    %v626 = vpop.xlane.xlu0 %625
    %v627 = vsel %vm148, %v615, 0.0
    %628 = vadd.xlane.f32.xlu0 %v627
    %v629 = vpop.xlane.xlu0 %628
    %v630 = vmul.f32 %v626, %v161
    %v631 = vmul.f32 %v629, %v161
    %v632 = vsub.f32 %v614, %v630
    %v633 = vsub.f32 %v615, %v631
    %v634 = vmul.f32 %v632, %v632
    %v635 = vmul.f32 %v633, %v633
    %v636 = vsel %vm148, %v634, 0.0
    %637 = vadd.xlane.f32.xlu0 %v636
    %v638 = vpop.xlane.xlu0 %637
    %v639 = vsel %vm148, %v635, 0.0
    %640 = vadd.xlane.f32.xlu0 %v639
    %v641 = vpop.xlane.xlu0 %640
    %v642 = vmul.f32 %v638, %v161
    %v643 = vmul.f32 %v641, %v161
    %v644 = vadd.f32 %v642, 1e-05
    %v645 = vadd.f32 %v643, 1e-05
    %v646 = vrsqrt.pop %v644
    %v647 = vmul.f32 %v646, %v644
    %v648 = vmul.f32 %v647, %v646
    %v649 = vmul.f32 0.5, %v648
    %v650 = vsub.f32 1.5, %v649
    %v651 = vmul.f32 %v646, %v650
    %vm652 = vweird.f32 %v644
    %vm653 = vweird.f32 %v646
    %vm654 = vmor %vm652, %vm653
    %v655 = vsel %vm654, %v646, %v651
    %v656 = vrsqrt.pop %v645
    %v657 = vmul.f32 %v656, %v645
    %v658 = vmul.f32 %v657, %v656
    %v659 = vmul.f32 0.5, %v658
    %v660 = vsub.f32 1.5, %v659
    %v661 = vmul.f32 %v656, %v660
    %vm662 = vweird.f32 %v645
    %vm663 = vweird.f32 %v656
    %vm664 = vmor %vm662, %vm663
    %v665 = vsel %vm664, %v656, %v661
    %v666 = vmul.f32 %v632, %v655
    %v667 = vmul.f32 %v633, %v665
    %v668 = vperm.slane %v616, 0
    %v669 = vmul.f32 %v666, %v668
    %v670 = vmul.f32 %v667, %v668
    %v671 = vperm.slane %v617, 0
    %v672 = vadd.f32 %v669, %v671
    %v673 = vadd.f32 %v670, %v671
    %v674 = vpack.c.bf16 %v673, %v672
    %s675 = scalar_lea.vmem %s2, 16
    %v676 = vld [vmem:[%s675] sm:$0xf]
    %v677 = vld [vmem:[%s675 + $0x4] sm:$0xf]
    %v678 = vld [vmem:[%s675 + $0x8] sm:$0xf]
    %v679 = vld [vmem:[%s675 + $0xc] sm:$0xf]
    %v680 = vperm.slane %v618, 0
    %v685 = vunpack.c.l.b16 %v676
    %v686 = vunpack.c.l.b16 %v677
    %v687 = vunpack.c.l.b16 %v678
    %v688 = vunpack.c.l.b16 %v679
    %v689 = vpack.c.b16 %v686, %v685
    %v690 = vpack.c.b16 %v688, %v687
    %v694 = vsel %vm148, %v674, 0
    %696 = vmatpush.bf16.msra.mxu0 0
    %697 = vmatpush.bf16.msra.mxu0 0
    %698 = vmatpush.bf16.msra.mxu0 0
    %699 = vmatpush.bf16.msra.mxu0 0
    %700 = vmatpush.bf16.msra.mxu0 0
    %701 = vmatpush.bf16.msra.mxu0 0
    %702 = vmatpush.bf16.msra.mxu0 %v690
    %703 = vmatpush.bf16.msra.mxu0 %v689
    %704 = vmatmul.bf16.gmra.mxu0 %v694
    %v705 = vpop.f32.mrf.mxu0
    %v706 = vadd.f32 %v680, %v705
    %v707 = vpop.f32.mrf.mxu0
    %v708 = vadd.f32 %v680, %v707
    %709 = vdwg.mxu0
    %v710 = vpack.c.bf16 %v708, %v706
    %712 = vrot.lane.b32.xlu0 %v710, 96
    %v713 = vpop.permute.xlu0 %712
    %v715 = vsel %vm245, %v710, 0
    %v718 = vsel %vm245, %v713, 0
    %720 = vmatpush.bf16.xpose.msra.mxu0 0
    %721 = vmatpush.bf16.xpose.msra.mxu0 0
    %722 = vmatpush.bf16.xpose.msra.mxu0 0
    %723 = vmatpush.bf16.xpose.msra.mxu0 0
    %724 = vmatpush.bf16.xpose.msra.mxu0 0
    %725 = vmatpush.bf16.xpose.msra.mxu0 0
    %726 = vmatpush.bf16.xpose.msra.mxu0 0
    %727 = vmatpush.bf16.xpose.msra.mxu0 %v718
    %728 = vmatmul.bf16.gmra.mxu0 %v715
    %v729 = vpop.f32.mrf.mxu0
    %v730 = vadd.f32 0.0, %v729
    %v731 = vpop.f32.mrf.mxu0
    %v732 = vadd.f32 0.0, %v731
    %733 = vdwg.mxu0
    %v734 = vmul.f32 %v730, 0.25
    %v735 = vmul.f32 %v732, 0.25
    %v736 = vadd.f32 %v734, %v138
    %v737 = vadd.f32 %v735, %v139
    %v738 = vsel %vm245, %v736, -inf
    %739 = vmax.xlane.f32.xlu0 %v738
    %v740 = vpop.xlane.xlu0 %739
    %v741 = vsel %vm245, %v737, -inf
    %742 = vmax.xlane.f32.xlu0 %v741
    %v743 = vpop.xlane.xlu0 %742
    %v744 = vsub.f32 %v736, %v740
    %v745 = vsub.f32 %v737, %v743
    %v746 = vmul.f32 %v744, 1.442695
    %v747 = vpow.pop %v746
    %v748 = vmul.f32 %v745, 1.442695
    %v749 = vpow.pop %v748
    %v750 = vsel %vm245, %v747, 0.0
    %751 = vadd.xlane.f32.xlu0 %v750
    %v752 = vpop.xlane.xlu0 %751
    %v753 = vsel %vm245, %v749, 0.0
    %754 = vadd.xlane.f32.xlu0 %v753
    %v755 = vpop.xlane.xlu0 %754
    %v756 = vrcp.pop %v752
    %v757 = vrcp.pop %v755
    %v758 = vmul.f32 %v747, %v756
    %v759 = vmul.f32 %v749, %v757
    %v760 = vpack.c.bf16 %v759, %v758
    %761 = vrot.lane.b32.xlu0 %v710, 64
    %v762 = vpop.permute.xlu0 %761
    %v765 = vsel %vm245, %v760, 0
    %767 = vmatpush.bf16.msra.mxu0 0
    %768 = vmatpush.bf16.msra.mxu0 0
    %769 = vmatpush.bf16.msra.mxu0 0
    %770 = vmatpush.bf16.msra.mxu0 0
    %771 = vmatpush.bf16.msra.mxu0 0
    %772 = vmatpush.bf16.msra.mxu0 0
    %773 = vmatpush.bf16.msra.mxu0 0
    %774 = vmatpush.bf16.msra.mxu0 %v762
    %775 = vmatmul.bf16.gmra.mxu0 %v765
    %v776 = vpop.f32.mrf.mxu0
    %v777 = vadd.f32 0.0, %v776
    %v778 = vpop.f32.mrf.mxu0
    %v779 = vadd.f32 0.0, %v778
    %780 = vdwg.mxu0
    %781 = vrot.lane.b32.xlu0 %v710, 112
    %v782 = vpop.permute.xlu0 %781
    %783 = vrot.lane.b32.xlu0 %v710, 80
    %v784 = vpop.permute.xlu0 %783
    %v786 = vsel %vm245, %v782, 0
    %v789 = vsel %vm245, %v784, 0
    %791 = vmatpush.bf16.xpose.msra.mxu0 0
    %792 = vmatpush.bf16.xpose.msra.mxu0 0
    %793 = vmatpush.bf16.xpose.msra.mxu0 0
    %794 = vmatpush.bf16.xpose.msra.mxu0 0
    %795 = vmatpush.bf16.xpose.msra.mxu0 0
    %796 = vmatpush.bf16.xpose.msra.mxu0 0
    %797 = vmatpush.bf16.xpose.msra.mxu0 0
    %798 = vmatpush.bf16.xpose.msra.mxu0 %v789
    %799 = vmatmul.bf16.gmra.mxu0 %v786
    %v800 = vpop.f32.mrf.mxu0
    %v801 = vadd.f32 0.0, %v800
    %v802 = vpop.f32.mrf.mxu0
    %v803 = vadd.f32 0.0, %v802
    %804 = vdwg.mxu0
    %v805 = vmul.f32 %v801, 0.25
    %v806 = vmul.f32 %v803, 0.25
    %v807 = vadd.f32 %v805, %v138
    %v808 = vadd.f32 %v806, %v139
    %v809 = vsel %vm245, %v807, -inf
    %810 = vmax.xlane.f32.xlu0 %v809
    %v811 = vpop.xlane.xlu0 %810
    %v812 = vsel %vm245, %v808, -inf
    %813 = vmax.xlane.f32.xlu0 %v812
    %v814 = vpop.xlane.xlu0 %813
    %v815 = vsub.f32 %v807, %v811
    %v816 = vsub.f32 %v808, %v814
    %v817 = vmul.f32 %v815, 1.442695
    %v818 = vpow.pop %v817
    %v819 = vmul.f32 %v816, 1.442695
    %v820 = vpow.pop %v819
    %v821 = vsel %vm245, %v818, 0.0
    %822 = vadd.xlane.f32.xlu0 %v821
    %v823 = vpop.xlane.xlu0 %822
    %v824 = vsel %vm245, %v820, 0.0
    %825 = vadd.xlane.f32.xlu0 %v824
    %v826 = vpop.xlane.xlu0 %825
    %v827 = vrcp.pop %v823
    %v828 = vrcp.pop %v826
    %v829 = vmul.f32 %v818, %v827
    %v830 = vmul.f32 %v820, %v828
    %v831 = vpack.c.bf16 %v830, %v829
    %832 = vrot.lane.b32.xlu0 %v710, 48
    %v833 = vpop.permute.xlu0 %832
    %v836 = vsel %vm245, %v831, 0
    %838 = vmatpush.bf16.msra.mxu0 0
    %839 = vmatpush.bf16.msra.mxu0 0
    %840 = vmatpush.bf16.msra.mxu0 0
    %841 = vmatpush.bf16.msra.mxu0 0
    %842 = vmatpush.bf16.msra.mxu0 0
    %843 = vmatpush.bf16.msra.mxu0 0
    %844 = vmatpush.bf16.msra.mxu0 0
    %845 = vmatpush.bf16.msra.mxu0 %v833
    %846 = vmatmul.bf16.gmra.mxu0 %v836
    %v847 = vpop.f32.mrf.mxu0
    %v848 = vadd.f32 0.0, %v847
    %v849 = vpop.f32.mrf.mxu0
    %v850 = vadd.f32 0.0, %v849
    %851 = vdwg.mxu0
    %854 = vrot.lane.b32.xlu0 %v848, 16
    %v855 = vpop.permute.xlu0 %854
    %856 = vrot.lane.b32.xlu0 %v850, 16
    %v857 = vpop.permute.xlu0 %856
    %v860 = vsel %vm245, %v777, %v855
    %v861 = vsel %vm245, %v779, %v857
    %v862 = vpack.c.bf16 %v861, %v860
    %s863 = scalar_lea.vmem %s3, 16
    %v864 = vld [vmem:[%s863] sm:$0xf]
    %v865 = vld [vmem:[%s863 + $0x4] sm:$0xf]
    %v866 = vld [vmem:[%s863 + $0x8] sm:$0xf]
    %v867 = vld [vmem:[%s863 + $0xc] sm:$0xf]
    %v868 = vperm.slane %v619, 0
    %v873 = vunpack.c.l.b16 %v864
    %v874 = vunpack.c.l.b16 %v865
    %v875 = vunpack.c.l.b16 %v866
    %v876 = vunpack.c.l.b16 %v867
    %v877 = vpack.c.b16 %v874, %v873
    %v878 = vpack.c.b16 %v876, %v875
    %v882 = vsel %vm148, %v862, 0
    %884 = vmatpush.bf16.msra.mxu0 0
    %885 = vmatpush.bf16.msra.mxu0 0
    %886 = vmatpush.bf16.msra.mxu0 0
    %887 = vmatpush.bf16.msra.mxu0 0
    %888 = vmatpush.bf16.msra.mxu0 0
    %889 = vmatpush.bf16.msra.mxu0 0
    %890 = vmatpush.bf16.msra.mxu0 %v878
    %891 = vmatpush.bf16.msra.mxu0 %v877
    %892 = vmatmul.bf16.gmra.mxu0 %v882
    %v893 = vpop.f32.mrf.mxu0
    %v894 = vadd.f32 %v868, %v893
    %v895 = vpop.f32.mrf.mxu0
    %v896 = vadd.f32 %v868, %v895
    %897 = vdwg.mxu0
    %v898 = vadd.f32 %v614, %v894
    %v899 = vadd.f32 %v615, %v896
    %v900 = vsel %vm148, %v898, 0.0
    %901 = vadd.xlane.f32.xlu0 %v900
    %v902 = vpop.xlane.xlu0 %901
    %v903 = vsel %vm148, %v899, 0.0
    %904 = vadd.xlane.f32.xlu0 %v903
    %v905 = vpop.xlane.xlu0 %904
    %v906 = vmul.f32 %v902, %v161
    %v907 = vmul.f32 %v905, %v161
    %v908 = vsub.f32 %v898, %v906
    %v909 = vsub.f32 %v899, %v907
    %v910 = vmul.f32 %v908, %v908
    %v911 = vmul.f32 %v909, %v909
    %v912 = vsel %vm148, %v910, 0.0
    %913 = vadd.xlane.f32.xlu0 %v912
    %v914 = vpop.xlane.xlu0 %913
    %v915 = vsel %vm148, %v911, 0.0
    %916 = vadd.xlane.f32.xlu0 %v915
    %v917 = vpop.xlane.xlu0 %916
    %v918 = vmul.f32 %v914, %v161
    %v919 = vmul.f32 %v917, %v161
    %v920 = vadd.f32 %v918, 1e-05
    %v921 = vadd.f32 %v919, 1e-05
    %v922 = vrsqrt.pop %v920
    %v923 = vmul.f32 %v922, %v920
    %v924 = vmul.f32 %v923, %v922
    %v925 = vmul.f32 0.5, %v924
    %v926 = vsub.f32 1.5, %v925
    %v927 = vmul.f32 %v922, %v926
    %vm928 = vweird.f32 %v920
    %vm929 = vweird.f32 %v922
    %vm930 = vmor %vm928, %vm929
    %v931 = vsel %vm930, %v922, %v927
    %v932 = vrsqrt.pop %v921
    %v933 = vmul.f32 %v932, %v921
    %v934 = vmul.f32 %v933, %v932
    %v935 = vmul.f32 0.5, %v934
    %v936 = vsub.f32 1.5, %v935
    %v937 = vmul.f32 %v932, %v936
    %vm938 = vweird.f32 %v921
    %vm939 = vweird.f32 %v932
    %vm940 = vmor %vm938, %vm939
    %v941 = vsel %vm940, %v932, %v937
    %v942 = vmul.f32 %v908, %v931
    %v943 = vmul.f32 %v909, %v941
    %v944 = vperm.slane %v620, 0
    %v945 = vmul.f32 %v942, %v944
    %v946 = vmul.f32 %v943, %v944
    %v947 = vperm.slane %v621, 0
    %v948 = vadd.f32 %v945, %v947
    %v949 = vadd.f32 %v946, %v947
    %v950 = vpack.c.bf16 %v949, %v948
    %s951 = scalar_lea.vmem %s4, 16
    %v952 = vld [vmem:[%s951] sm:$0xf]
    %v953 = vld [vmem:[%s951 + $0x4] sm:$0xf]
    %v954 = vld [vmem:[%s951 + $0x8] sm:$0xf]
    %v955 = vld [vmem:[%s951 + $0xc] sm:$0xf]
    %v956 = vperm.slane %v622, 0
    %v961 = vunpack.c.l.b16 %v952
    %v962 = vunpack.c.l.b16 %v953
    %v963 = vunpack.c.l.b16 %v954
    %v964 = vunpack.c.l.b16 %v955
    %v965 = vpack.c.b16 %v962, %v961
    %v966 = vpack.c.b16 %v964, %v963
    %v970 = vsel %vm148, %v950, 0
    %972 = vmatpush.bf16.msra.mxu0 0
    %973 = vmatpush.bf16.msra.mxu0 0
    %974 = vmatpush.bf16.msra.mxu0 0
    %975 = vmatpush.bf16.msra.mxu0 0
    %976 = vmatpush.bf16.msra.mxu0 0
    %977 = vmatpush.bf16.msra.mxu0 0
    %978 = vmatpush.bf16.msra.mxu0 %v966
    %979 = vmatpush.bf16.msra.mxu0 %v965
    %980 = vmatmul.bf16.gmra.mxu0 %v970
    %v981 = vpop.f32.mrf.mxu0
    %v982 = vadd.f32 %v956, %v981
    %v983 = vpop.f32.mrf.mxu0
    %v984 = vadd.f32 %v956, %v983
    %985 = vdwg.mxu0
    %v986 = vmul.f32 %v982, %v982
    %v987 = vmul.f32 %v984, %v984
    %v988 = vmul.f32 %v982, %v986
    %v989 = vmul.f32 %v984, %v987
    %v990 = vmul.f32 %v988, 0.044715
    %v991 = vmul.f32 %v989, 0.044715
    %v992 = vadd.f32 %v982, %v990
    %v993 = vadd.f32 %v984, %v991
    %v994 = vmul.f32 %v992, 0.7978846
    %v995 = vmul.f32 %v993, 0.7978846
    %v996 = vtanh.pop %v994
    %v997 = vtanh.pop %v995
    %v998 = vadd.f32 %v996, 1.0
    %v999 = vadd.f32 %v997, 1.0
    %v1000 = vmul.f32 %v998, 0.5
    %v1001 = vmul.f32 %v999, 0.5
    %v1002 = vmul.f32 %v982, %v1000
    %v1003 = vmul.f32 %v984, %v1001
    %v1004 = vpack.c.bf16 %v1003, %v1002
    %s1005 = scalar_lea.vmem %s5, 64
    %v1006 = vld [vmem:[%s1005] sm:$0xf]
    %v1007 = vld [vmem:[%s1005 + $0x4] sm:$0xf]
    %v1008 = vld [vmem:[%s1005 + $0x8] sm:$0xf]
    %v1009 = vld [vmem:[%s1005 + $0xc] sm:$0xf]
    %v1010 = vld [vmem:[%s1005 + $0x10] sm:$0xf]
    %v1011 = vld [vmem:[%s1005 + $0x14] sm:$0xf]
    %v1012 = vld [vmem:[%s1005 + $0x18] sm:$0xf]
    %v1013 = vld [vmem:[%s1005 + $0x1c] sm:$0xf]
    %v1014 = vld [vmem:[%s1005 + $0x20] sm:$0xf]
    %v1015 = vld [vmem:[%s1005 + $0x24] sm:$0xf]
    %v1016 = vld [vmem:[%s1005 + $0x28] sm:$0xf]
    %v1017 = vld [vmem:[%s1005 + $0x2c] sm:$0xf]
    %v1018 = vld [vmem:[%s1005 + $0x30] sm:$0xf]
    %v1019 = vld [vmem:[%s1005 + $0x34] sm:$0xf]
    %v1020 = vld [vmem:[%s1005 + $0x38] sm:$0xf]
    %v1021 = vld [vmem:[%s1005 + $0x3c] sm:$0xf]
    %v1022 = vperm.slane %v623, 0
    %v1039 = vunpack.c.l.b16 %v1006
    %v1040 = vunpack.c.l.b16 %v1007
    %v1041 = vunpack.c.l.b16 %v1008
    %v1042 = vunpack.c.l.b16 %v1009
    %v1043 = vunpack.c.l.b16 %v1010
    %v1044 = vunpack.c.l.b16 %v1011
    %v1045 = vunpack.c.l.b16 %v1012
    %v1046 = vunpack.c.l.b16 %v1013
    %v1047 = vunpack.c.l.b16 %v1014
    %v1048 = vunpack.c.l.b16 %v1015
    %v1049 = vunpack.c.l.b16 %v1016
    %v1050 = vunpack.c.l.b16 %v1017
    %v1051 = vunpack.c.l.b16 %v1018
    %v1052 = vunpack.c.l.b16 %v1019
    %v1053 = vunpack.c.l.b16 %v1020
    %v1054 = vunpack.c.l.b16 %v1021
    %v1055 = vpack.c.b16 %v1040, %v1039
    %v1056 = vpack.c.b16 %v1042, %v1041
    %v1057 = vpack.c.b16 %v1044, %v1043
    %v1058 = vpack.c.b16 %v1046, %v1045
    %v1059 = vpack.c.b16 %v1048, %v1047
    %v1060 = vpack.c.b16 %v1050, %v1049
    %v1061 = vpack.c.b16 %v1052, %v1051
    %v1062 = vpack.c.b16 %v1054, %v1053
    %1071 = vmatpush.bf16.msra.mxu0 %v1062
    %1072 = vmatpush.bf16.msra.mxu0 %v1061
    %1073 = vmatpush.bf16.msra.mxu0 %v1060
    %1074 = vmatpush.bf16.msra.mxu0 %v1059
    %1075 = vmatpush.bf16.msra.mxu0 %v1058
    %1076 = vmatpush.bf16.msra.mxu0 %v1057
    %1077 = vmatpush.bf16.msra.mxu0 %v1056
    %1078 = vmatpush.bf16.msra.mxu0 %v1055
    %1079 = vmatmul.bf16.gmra.mxu0 %v1004
    %v1080 = vpop.f32.mrf.mxu0
    %v1081 = vadd.f32 %v1022, %v1080
    %v1082 = vpop.f32.mrf.mxu0
    %v1083 = vadd.f32 %v1022, %v1082
    %1084 = vdwg.mxu0
    %v1085 = vadd.f32 %v898, %v1081
    %v1086 = vadd.f32 %v899, %v1083
    %v1088 = vrot.slane %v1085, 7
    %v1091 = vrot.slane %v1086, 6
    %vm1093 = vcmask 1040384
    %v1094 = vsel %vm1093, %v1088, %v1091
    %v1095 = vld [vmem:[%s6 + $0x20] sm:$0x1]
    %v1096 = vld [vmem:[%s6 + $0x21] sm:$0x1]
    %vm1097 = vcmask 254976
    %v1098 = vsel %vm1097, %v1094, 0.0
    %1099 = vadd.xlane.f32.xlu0 %v1098
    %v1100 = vpop.xlane.xlu0 %1099
    %v1101 = vmul.f32 %v1100, %v161
    %v1102 = vsub.f32 %v1094, %v1101
    %v1103 = vmul.f32 %v1102, %v1102
    %v1104 = vsel %vm1097, %v1103, 0.0
    %1105 = vadd.xlane.f32.xlu0 %v1104
    %v1106 = vpop.xlane.xlu0 %1105
    %v1107 = vmul.f32 %v1106, %v161
    %v1108 = vadd.f32 %v1107, 1e-05
    %v1109 = vrsqrt.pop %v1108
    %v1110 = vmul.f32 %v1109, %v1108
    %v1111 = vmul.f32 %v1110, %v1109
    %v1112 = vmul.f32 0.5, %v1111
    %v1113 = vsub.f32 1.5, %v1112
    %v1114 = vmul.f32 %v1109, %v1113
    %vm1115 = vweird.f32 %v1108
    %vm1116 = vweird.f32 %v1109
    %vm1117 = vmor %vm1115, %vm1116
    %v1118 = vsel %vm1117, %v1109, %v1114
    %v1119 = vmul.f32 %v1102, %v1118
    %v1120 = vperm.slane %v1095, 0
    %v1121 = vmul.f32 %v1119, %v1120
    %v1122 = vperm.slane %v1096, 0
    %v1123 = vadd.f32 %v1121, %v1122
    %v1124 = vpack.c.bf16 %v1123, %v1123
    %v1125 = vld [vmem:[%s1] sm:$0xf]
    %v1126 = vld [vmem:[%s1 + $0x4] sm:$0xf]
    %v1127 = vld [vmem:[%s1 + $0x8] sm:$0xf]
    %v1128 = vld [vmem:[%s1 + $0xc] sm:$0xf]
    %v1129 = vld [vmem:[%s1 + $0x10] sm:$0xf]
    %v1130 = vld [vmem:[%s1 + $0x14] sm:$0xf]
    %v1131 = vld [vmem:[%s1 + $0x18] sm:$0xf]
    %v1132 = vld [vmem:[%s1 + $0x1c] sm:$0xf]
    %v1133 = vld [vmem:[%s1 + $0x20] sm:$0xf]
    %v1134 = vld [vmem:[%s1 + $0x24] sm:$0xf]
    %v1135 = vld [vmem:[%s1 + $0x28] sm:$0xf]
    %v1136 = vld [vmem:[%s1 + $0x2c] sm:$0xf]
    %v1137 = vld [vmem:[%s1 + $0x30] sm:$0xf]
    %v1138 = vld [vmem:[%s1 + $0x34] sm:$0xf]
    %v1139 = vld [vmem:[%s1 + $0x38] sm:$0xf]
    %v1140 = vld [vmem:[%s1 + $0x3c] sm:$0xf]
    %v1157 = vunpack.c.l.b16 %v1125
    %v1158 = vunpack.c.l.b16 %v1126
    %v1159 = vunpack.c.l.b16 %v1127
    %v1160 = vunpack.c.l.b16 %v1128
    %v1161 = vunpack.c.l.b16 %v1129
    %v1162 = vunpack.c.l.b16 %v1130
    %v1163 = vunpack.c.l.b16 %v1131
    %v1164 = vunpack.c.l.b16 %v1132
    %v1165 = vunpack.c.l.b16 %v1133
    %v1166 = vunpack.c.l.b16 %v1134
    %v1167 = vunpack.c.l.b16 %v1135
    %v1168 = vunpack.c.l.b16 %v1136
    %v1169 = vunpack.c.l.b16 %v1137
    %v1170 = vunpack.c.l.b16 %v1138
    %v1171 = vunpack.c.l.b16 %v1139
    %v1172 = vunpack.c.l.b16 %v1140
    %v1173 = vpack.c.b16 %v1158, %v1157
    %v1174 = vpack.c.b16 %v1160, %v1159
    %v1175 = vpack.c.b16 %v1162, %v1161
    %v1176 = vpack.c.b16 %v1164, %v1163
    %v1177 = vpack.c.b16 %v1166, %v1165
    %v1178 = vpack.c.b16 %v1168, %v1167
    %v1179 = vpack.c.b16 %v1170, %v1169
    %v1180 = vpack.c.b16 %v1172, %v1171
    %v1182 = vsel %vm148, %v1124, 0
    %v1185 = vsel %vm148, %v1173, 0
    %v1188 = vsel %vm148, %v1174, 0
    %v1191 = vsel %vm148, %v1175, 0
    %v1194 = vsel %vm148, %v1176, 0
    %v1197 = vsel %vm148, %v1177, 0
    %v1200 = vsel %vm148, %v1178, 0
    %v1203 = vsel %vm148, %v1179, 0
    %v1206 = vsel %vm148, %v1180, 0
    %1208 = vmatpush.bf16.xpose.msra.mxu0 %v1206
    %1209 = vmatpush.bf16.xpose.msra.mxu0 %v1203
    %1210 = vmatpush.bf16.xpose.msra.mxu0 %v1200
    %1211 = vmatpush.bf16.xpose.msra.mxu0 %v1197
    %1212 = vmatpush.bf16.xpose.msra.mxu0 %v1194
    %1213 = vmatpush.bf16.xpose.msra.mxu0 %v1191
    %1214 = vmatpush.bf16.xpose.msra.mxu0 %v1188
    %1215 = vmatpush.bf16.xpose.msra.mxu0 %v1185
    %1216 = vmatmul.bf16.gmra.mxu0 %v1182
    %v1217 = vpop.f32.mrf.mxu0
    %v1218 = vadd.f32 0.0, %v1217
    %v1219 = vpop.f32.mrf.mxu0
    %1220 = vdwg.mxu0
    %1221 = vst [vmem:[#allocation2] sm:$0x3] %v1218
    // Predicated region
    $region30: #{gpt_forward.1} parent=1 // pred_check
      _
    $region31: #{gpt_forward.1} parent=1 // pred_check_branch
      %1223 = sbr.rel (0) target = $region33
    $region32: #{gpt_forward.1} parent=1 // pred_region
      %1225 = vsyncadd [#allocation3], 0
      %s1227 = sshll.u32 [#allocation2], 4
      %s1228 = int_to_ptr.vmem [resolvable:$true] %s1227
      %s1229 = sshll.u32 %s7, 4
      %s1230 = int_to_ptr.hbm [resolvable:$true] %s1229
      %1232 = dma.vmem_to_hbm [thread:$0]  %s1228, 32, %s1230, [#allocation3]
    $region33: #{gpt_forward.1} parent=1 // pred_fallthru
      _
    // Predicated region
    $region34: #{gpt_forward.1} parent=1 // pred_check
      _
    $region35: #{gpt_forward.1} parent=1 // pred_check_branch
      %1234 = sbr.rel (0) target = $region37
    $region36: #{gpt_forward.1} parent=1 // pred_region
      %1236 = dma.done [#allocation3], 32
    $region37: #{gpt_forward.1} parent=1 // pred_fallthru
      _
    %1237 = vsyncpa [#allocation3], 1

</llo_original>
